<compile_context>
chip_gen: v6e
topology: v6e:2x2x1
jax: 0.10.0
libtpu: 0.0.40
codegen_flags: <defaults>
</compile_context>

<pallas_src>
import functools

import jax
import jax.numpy as jnp
from jax import lax
from jax.experimental import pallas as pl
from jax.experimental.pallas import tpu as pltpu


# ----------------------------------------------------------------------------
# LayerNorm matching utils.LayerNormalization:
#   (x - mean) / (std_unbiased + eps) * a + b, eps = 1e-3
# ----------------------------------------------------------------------------
def _layer_norm(x, a, b, eps=1e-3):
    n = x.shape[-1]
    mu = jnp.mean(x, axis=-1, keepdims=True)
    var = jnp.sum((x - mu) ** 2, axis=-1, keepdims=True) / (n - 1)
    inv = pl.reciprocal(jnp.sqrt(var) + eps, approx=False)   # exact, EUP path
    return (x - mu) * inv * a + b


# ----------------------------------------------------------------------------
# Fused kernel: masked tanh-RNN recurrence + rep2val head
# ----------------------------------------------------------------------------
def fused_kernel(xproj_ref, lens_ref, w_hh_ref,
                 a1_ref, b1_ref, w1_ref, c1_ref,
                 a2_ref, b2_ref, w2_ref, c2_ref,
                 a3_ref, b3_ref, w3_ref, c3_ref,
                 out_ref):
    """xproj_ref: (T, TB, H) pre-projected inputs (bf16 or f32)
       lens_ref : (TB, 1) int32
       out_ref  : (TB, 128) f32 (lane-dense; only [:, :2] meaningful)."""
    T, TB, H = xproj_ref.shape

    lens = lens_ref[...]                       # (TB, 1) int32
    # W_hh loaded ONCE and reused across all T steps (not re-staged per iter).
    w_hh = w_hh_ref[...]
    mxu_dtype = w_hh.dtype

    # ---- Serial recurrence: h_prev @ W_hh (bf16 MXU inputs, f32 accumulate),
    #      tanh in f32, one vselect per step to freeze padded positions.
    def body(t, h_prev):
        h_new = jnp.tanh(
            jnp.dot(h_prev.astype(mxu_dtype), w_hh,
                    preferred_element_type=jnp.float32)
            + xproj_ref[t].astype(jnp.float32))
        # Freeze state where t >= lens[b]; with trailing padding the final h
        # equals os[lens-1, b] (replaces the PyTorch gather).
        return jnp.where(lens > t, h_new, h_prev)

    h = lax.fori_loop(0, T, body, jnp.zeros((TB, H), jnp.float32),
                      unroll=min(T, 8))

    # ---- rep2val head (dropout layers are identity in eval mode), all f32.
    x = _layer_norm(h, a1_ref[...], b1_ref[...])
    x = jnp.maximum(
        jnp.dot(x, w1_ref[...], preferred_element_type=jnp.float32) + c1_ref[...],
        0.0)
    x = _layer_norm(x, a2_ref[...], b2_ref[...])
    x = jnp.maximum(
        jnp.dot(x, w2_ref[...], preferred_element_type=jnp.float32) + c2_ref[...],
        0.0)
    x = _layer_norm(x, a3_ref[...], b3_ref[...])
    # Lane-dense store: w3/c3 are zero-padded to 128 output lanes.
    out_ref[...] = (
        jnp.dot(x, w3_ref[...], preferred_element_type=jnp.float32) + c3_ref[...])


# ----------------------------------------------------------------------------
# pallas_call wrapper: batch grid ("parallel" -> megacore / v7x dual-TC)
# ----------------------------------------------------------------------------
def run_model(xproj, lens_col, w_hh, head, *, batch_tile=128):
    T, B, H = xproj.shape
    TB = min(batch_tile, B)
    grid = (pl.cdiv(B, TB),)

    def full(shape):
        return pl.BlockSpec(shape, lambda i, _n=len(shape): (0,) * _n)

    in_specs = [
        pl.BlockSpec((T, TB, H), lambda i: (0, i, 0)),   # activations, batch tile
        pl.BlockSpec((TB, 1), lambda i: (i, 0)),         # lens, batch tile
        full((H, H)),                                    # W_hh
        full((1, H)), full((1, H)), full((H, 16)), full((1, 16)),     # LN1, Lin1
        full((1, 16)), full((1, 16)), full((16, 16)), full((1, 16)),  # LN2, Lin2
        full((1, 16)), full((1, 16)), full((16, 128)), full((1, 128)),# LN3, Lin3(pad)
    ]
    out_spec = pl.BlockSpec((TB, 128), lambda i: (i, 0))

    out_pad = pl.pallas_call(
        fused_kernel,
        out_shape=jax.ShapeDtypeStruct((B, 128), jnp.float32),
        grid=grid,
        in_specs=in_specs,
        out_specs=out_spec,
        compiler_params=pltpu.CompilerParams(
            dimension_semantics=("parallel",),
            vmem_limit_bytes=32 * 1024 * 1024),   # small footprint; v7x-safe
    )(xproj, lens_col, w_hh,
      head["ln1_a"], head["ln1_b"], head["w1"], head["c1"],
      head["ln2_a"], head["ln2_b"], head["w2"], head["c2"],
      head["ln3_a"], head["ln3_b"], head["w3"], head["c3"])
    return out_pad


@functools.partial(jax.jit, static_argnames=("padding_idx", "batch_tile"))
def model_forward(seq, proj_table, w_hh, head, padding_idx=0, batch_tile=128):
    """seq: (T, B) int32, time-major with trailing padding (lens >= 1)."""
    T, B = seq.shape
    pad_mask = (seq == padding_idx)                                   # (T, B)
    lens = (T - jnp.sum(pad_mask.astype(jnp.int32), axis=0)).astype(jnp.int32)

    # Gather of the PRE-PROJECTED table: embedding + emb2inp + RNN input
    # projection are all baked into proj_table (eval-time constant), so there
    # is no separate (T,B,E) embedding tensor and no in-kernel input matmul.
    # TODO(synk): at very large vocab/T an in-kernel DMA gather (scalar-prefetch
    # seq + memory_space=pl.ANY table) would remove this XLA gather too.
    xproj = proj_table[seq]                                           # (T, B, H)

    out = run_model(xproj, lens.reshape(B, 1), w_hh, head,
                    batch_tile=batch_tile)                            # (B, 128)
    return out[:, :2]


# ----------------------------------------------------------------------------
# One-time (eval) precompute: fuse embedding/emb2inp/input-projection, cast to
# bf16 for the streamed tensors and MXU weights, pad final linear lane-dense.
# ----------------------------------------------------------------------------
def precompute_eval_constants(emb_table, params, mxu_dtype=jnp.bfloat16):
    w_in = jnp.dot(params["w_e2i"], params["w_xh"])                   # (E, H)
    b_in = jnp.dot(params["b_e2i"], params["w_xh"]) + params["b_h"]   # (1, H)
    # proj_table[v] = emb_table[v] @ W_in + b_in.  The padding row maps to b_in,
    # which is harmless: the mask freezes h at padded steps.
    proj_table = (jnp.dot(emb_table, w_in) + b_in).astype(mxu_dtype)  # (V, H)

    w_hh = params["w_hh"].astype(mxu_dtype)

    w3p = jnp.zeros((16, 128), jnp.float32).at[:, :2].set(params["w3"])
    c3p = jnp.zeros((1, 128), jnp.float32).at[:, :2].set(params["c3"])

    head = {
        "ln1_a": params["ln1_a"], "ln1_b": params["ln1_b"],
        "w1": params["w1"], "c1": params["c1"],
        "ln2_a": params["ln2_a"], "ln2_b": params["ln2_b"],
        "w2": params["w2"], "c2": params["c2"],
        "ln3_a": params["ln3_a"], "ln3_b": params["ln3_b"],
        "w3": w3p, "c3": c3p,
    }
    return proj_table, w_hh, head


# ----------------------------------------------------------------------------
# Deterministic parameter construction
# ----------------------------------------------------------------------------
def make_params(key, num_words, edim, hdim, padding_idx):
    ks = jax.random.split(key, 12)

    def lin(k, i, o, scale=0.1):
        return jax.random.normal(k, (i, o), jnp.float32) * scale

    emb_table = jax.random.normal(ks[0], (num_words, edim), jnp.float32) * 0.1
    emb_table = emb_table.at[padding_idx].set(0.0)

    params = {
        # emb2inp: Linear(edim, edim)
        "w_e2i": lin(ks[1], edim, edim),
        "b_e2i": jax.random.normal(ks[2], (1, edim), jnp.float32) * 0.01,
        # encoder (masked tanh RNN with odim = hdim)
        "w_xh": lin(ks[3], edim, hdim),
        "w_hh": lin(ks[4], hdim, hdim),
        "b_h": jax.random.normal(ks[5], (1, hdim), jnp.float32) * 0.01,
        # rep2val
        "ln1_a": jnp.ones((1, hdim), jnp.float32),
        "ln1_b": jnp.zeros((1, hdim), jnp.float32),
        "w1": lin(ks[6], hdim, 16),
        "c1": jax.random.normal(ks[7], (1, 16), jnp.float32) * 0.01,
        "ln2_a": jnp.ones((1, 16), jnp.float32),
        "ln2_b": jnp.zeros((1, 16), jnp.float32),
        "w2": lin(ks[8], 16, 16),
        "c2": jax.random.normal(ks[9], (1, 16), jnp.float32) * 0.01,
        "ln3_a": jnp.ones((1, 16), jnp.float32),
        "ln3_b": jnp.zeros((1, 16), jnp.float32),
        "w3": lin(ks[10], 16, 2),
        "c3": jax.random.normal(ks[11], (1, 2), jnp.float32) * 0.01,
    }
    return emb_table, params


if __name__ == "__main__":
    key = jax.random.PRNGKey(0)
    # (8,128)-aligned small shapes: B multiple of 8 (sublanes), E/H = 128 (lanes).
    T, B = 8, 16
    num_words, edim, hdim = 50, 128, 128
    padding_idx = 0

    k_param, k_seq = jax.random.split(key)
    emb_table, params = make_params(k_param, num_words, edim, hdim, padding_idx)

    # One-time eval constants (outside the per-call jit path).
    proj_table, w_hh, head = precompute_eval_constants(emb_table, params)

    # Time-major (T, B) int sequence with trailing padding per column (lens >= 1).
    seq = jax.random.randint(k_seq, (T, B), 1, num_words, dtype=jnp.int32)
    lens = jnp.array([8, 5, 3, 6, 8, 2, 7, 4, 1, 8, 6, 5, 4, 3, 7, 2], jnp.int32)
    t_idx = jnp.arange(T)[:, None]                               # (T, 1)
    seq = jnp.where(t_idx < lens[None, :], seq, padding_idx).astype(jnp.int32)

    # Small demo: batch_tile=8 keeps a 2-step grid (v7x dual-TC); for real
    # batches leave the default batch_tile=128 (fills MXU rows per RNN step).
    val = model_forward(seq, proj_table, w_hh, head,
                        padding_idx=padding_idx, batch_tile=8)
    val = jax.block_until_ready(val)
    assert val.shape == (B, 2) and val.dtype == jnp.float32
    print("KERNEL_OK")
</pallas_src>

<mosaic_0001>
module attributes {stable_mosaic.version = 11 : i64} {
  func.func @fused_kernel(%arg0: i32, %arg1: memref<8x8x128xbf16, #tpu.memory_space<vmem>>, %arg2: memref<8x1xi32, #tpu.memory_space<vmem>>, %arg3: memref<128x128xbf16, #tpu.memory_space<vmem>>, %arg4: memref<1x128xf32, #tpu.memory_space<vmem>>, %arg5: memref<1x128xf32, #tpu.memory_space<vmem>>, %arg6: memref<128x16xf32, #tpu.memory_space<vmem>>, %arg7: memref<1x16xf32, #tpu.memory_space<vmem>>, %arg8: memref<1x16xf32, #tpu.memory_space<vmem>>, %arg9: memref<1x16xf32, #tpu.memory_space<vmem>>, %arg10: memref<16x16xf32, #tpu.memory_space<vmem>>, %arg11: memref<1x16xf32, #tpu.memory_space<vmem>>, %arg12: memref<1x16xf32, #tpu.memory_space<vmem>>, %arg13: memref<1x16xf32, #tpu.memory_space<vmem>>, %arg14: memref<16x128xf32, #tpu.memory_space<vmem>>, %arg15: memref<1x128xf32, #tpu.memory_space<vmem>>, %arg16: memref<8x128xf32, #tpu.memory_space<vmem>>) attributes {dimension_semantics = [#tpu.dimension_semantics<parallel>], iteration_bounds = array<i64: 2>, scalar_prefetch = 0 : i64, scratch_operands = 0 : i64, tpu.core_type = #tpu.core_type<tc>, window_params = [{transform_indices = @transform_0, window_bounds = array<i64: 8, 8, 128>}, {transform_indices = @transform_1, window_bounds = array<i64: 8, 1>}, {pipeline_mode = #tpu.pipeline_mode<synchronous>, transform_indices = @transform_2, window_bounds = array<i64: 128, 128>}, {pipeline_mode = #tpu.pipeline_mode<synchronous>, transform_indices = @transform_3, window_bounds = array<i64: 1, 128>}, {pipeline_mode = #tpu.pipeline_mode<synchronous>, transform_indices = @transform_4, window_bounds = array<i64: 1, 128>}, {pipeline_mode = #tpu.pipeline_mode<synchronous>, transform_indices = @transform_5, window_bounds = array<i64: 128, 16>}, {pipeline_mode = #tpu.pipeline_mode<synchronous>, transform_indices = @transform_6, window_bounds = array<i64: 1, 16>}, {pipeline_mode = #tpu.pipeline_mode<synchronous>, transform_indices = @transform_7, window_bounds = array<i64: 1, 16>}, {pipeline_mode = #tpu.pipeline_mode<synchronous>, transform_indices = @transform_8, window_bounds = array<i64: 1, 16>}, {pipeline_mode = #tpu.pipeline_mode<synchronous>, transform_indices = @transform_9, window_bounds = array<i64: 16, 16>}, {pipeline_mode = #tpu.pipeline_mode<synchronous>, transform_indices = @transform_10, window_bounds = array<i64: 1, 16>}, {pipeline_mode = #tpu.pipeline_mode<synchronous>, transform_indices = @transform_11, window_bounds = array<i64: 1, 16>}, {pipeline_mode = #tpu.pipeline_mode<synchronous>, transform_indices = @transform_12, window_bounds = array<i64: 1, 16>}, {pipeline_mode = #tpu.pipeline_mode<synchronous>, transform_indices = @transform_13, window_bounds = array<i64: 16, 128>}, {pipeline_mode = #tpu.pipeline_mode<synchronous>, transform_indices = @transform_14, window_bounds = array<i64: 1, 128>}, {transform_indices = @transform_15, window_bounds = array<i64: 8, 128>}]} {
    %c0 = arith.constant 0 : index
    %c0_0 = arith.constant 0 : index
    %0 = vector.load %arg2[%c0, %c0_0] : memref<8x1xi32, #tpu.memory_space<vmem>>, vector<8x1xi32>
    %c0_1 = arith.constant 0 : index
    %c0_2 = arith.constant 0 : index
    %1 = vector.load %arg3[%c0_1, %c0_2] : memref<128x128xbf16, #tpu.memory_space<vmem>>, vector<128x128xbf16>
    %cst = arith.constant 0.000000e+00 : f32
    %2 = vector.broadcast %cst : f32 to vector<8x128xf32>
    %c0_i32 = arith.constant 0 : i32
    %3 = arith.truncf %2 : vector<8x128xf32> to vector<8x128xbf16>
    %cst_3 = arith.constant dense<0.000000e+00> : vector<8x128xf32>
    %4 = tpu.matmul %3, %1, %cst_3 {dimension_numbers = #tpu.dot_dimension_numbers<[1], [0], [0], [1], [0, 0, 1, 1], [], []>} : vector<8x128xbf16>, vector<128x128xbf16>, vector<8x128xf32> -> vector<8x128xf32>
    %5 = arith.index_cast %c0_i32 : i32 to index
    %c0_4 = arith.constant 0 : index
    %c0_5 = arith.constant 0 : index
    %6 = vector.load %arg1[%5, %c0_4, %c0_5] : memref<8x8x128xbf16, #tpu.memory_space<vmem>>, vector<1x8x128xbf16>
    %7 = vector.shape_cast %6 : vector<1x8x128xbf16> to vector<8x128xbf16>
    %8 = arith.extf %7 : vector<8x128xbf16> to vector<8x128xf32>
    %9 = arith.addf %4, %8 : vector<8x128xf32>
    %10 = math.tanh %9 : vector<8x128xf32>
    %11 = vector.broadcast %c0_i32 : i32 to vector<8x1xi32>
    %12 = arith.cmpi sgt, %0, %11 : vector<8x1xi32>
    %13 = vector.shape_cast %12 : vector<8x1xi1> to vector<8x1xi1>
    %14 = vector.broadcast %13 : vector<8x1xi1> to vector<8x128xi1>
    %15 = arith.select %14, %10, %2 : vector<8x128xi1>, vector<8x128xf32>
    %c1_i32 = arith.constant 1 : i32
    %16 = arith.truncf %15 : vector<8x128xf32> to vector<8x128xbf16>
    %cst_6 = arith.constant dense<0.000000e+00> : vector<8x128xf32>
    %17 = tpu.matmul %16, %1, %cst_6 {dimension_numbers = #tpu.dot_dimension_numbers<[1], [0], [0], [1], [0, 0, 1, 1], [], []>} : vector<8x128xbf16>, vector<128x128xbf16>, vector<8x128xf32> -> vector<8x128xf32>
    %18 = arith.index_cast %c1_i32 : i32 to index
    %c0_7 = arith.constant 0 : index
    %c0_8 = arith.constant 0 : index
    %19 = vector.load %arg1[%18, %c0_7, %c0_8] : memref<8x8x128xbf16, #tpu.memory_space<vmem>>, vector<1x8x128xbf16>
    %20 = vector.shape_cast %19 : vector<1x8x128xbf16> to vector<8x128xbf16>
    %21 = arith.extf %20 : vector<8x128xbf16> to vector<8x128xf32>
    %22 = arith.addf %17, %21 : vector<8x128xf32>
    %23 = math.tanh %22 : vector<8x128xf32>
    %24 = vector.broadcast %c1_i32 : i32 to vector<8x1xi32>
    %25 = arith.cmpi sgt, %0, %24 : vector<8x1xi32>
    %26 = vector.shape_cast %25 : vector<8x1xi1> to vector<8x1xi1>
    %27 = vector.broadcast %26 : vector<8x1xi1> to vector<8x128xi1>
    %28 = arith.select %27, %23, %15 : vector<8x128xi1>, vector<8x128xf32>
    %c2_i32 = arith.constant 2 : i32
    %29 = arith.truncf %28 : vector<8x128xf32> to vector<8x128xbf16>
    %cst_9 = arith.constant dense<0.000000e+00> : vector<8x128xf32>
    %30 = tpu.matmul %29, %1, %cst_9 {dimension_numbers = #tpu.dot_dimension_numbers<[1], [0], [0], [1], [0, 0, 1, 1], [], []>} : vector<8x128xbf16>, vector<128x128xbf16>, vector<8x128xf32> -> vector<8x128xf32>
    %31 = arith.index_cast %c2_i32 : i32 to index
    %c0_10 = arith.constant 0 : index
    %c0_11 = arith.constant 0 : index
    %32 = vector.load %arg1[%31, %c0_10, %c0_11] : memref<8x8x128xbf16, #tpu.memory_space<vmem>>, vector<1x8x128xbf16>
    %33 = vector.shape_cast %32 : vector<1x8x128xbf16> to vector<8x128xbf16>
    %34 = arith.extf %33 : vector<8x128xbf16> to vector<8x128xf32>
    %35 = arith.addf %30, %34 : vector<8x128xf32>
    %36 = math.tanh %35 : vector<8x128xf32>
    %37 = vector.broadcast %c2_i32 : i32 to vector<8x1xi32>
    %38 = arith.cmpi sgt, %0, %37 : vector<8x1xi32>
    %39 = vector.shape_cast %38 : vector<8x1xi1> to vector<8x1xi1>
    %40 = vector.broadcast %39 : vector<8x1xi1> to vector<8x128xi1>
    %41 = arith.select %40, %36, %28 : vector<8x128xi1>, vector<8x128xf32>
    %c3_i32 = arith.constant 3 : i32
    %42 = arith.truncf %41 : vector<8x128xf32> to vector<8x128xbf16>
    %cst_12 = arith.constant dense<0.000000e+00> : vector<8x128xf32>
    %43 = tpu.matmul %42, %1, %cst_12 {dimension_numbers = #tpu.dot_dimension_numbers<[1], [0], [0], [1], [0, 0, 1, 1], [], []>} : vector<8x128xbf16>, vector<128x128xbf16>, vector<8x128xf32> -> vector<8x128xf32>
    %44 = arith.index_cast %c3_i32 : i32 to index
    %c0_13 = arith.constant 0 : index
    %c0_14 = arith.constant 0 : index
    %45 = vector.load %arg1[%44, %c0_13, %c0_14] : memref<8x8x128xbf16, #tpu.memory_space<vmem>>, vector<1x8x128xbf16>
    %46 = vector.shape_cast %45 : vector<1x8x128xbf16> to vector<8x128xbf16>
    %47 = arith.extf %46 : vector<8x128xbf16> to vector<8x128xf32>
    %48 = arith.addf %43, %47 : vector<8x128xf32>
    %49 = math.tanh %48 : vector<8x128xf32>
    %50 = vector.broadcast %c3_i32 : i32 to vector<8x1xi32>
    %51 = arith.cmpi sgt, %0, %50 : vector<8x1xi32>
    %52 = vector.shape_cast %51 : vector<8x1xi1> to vector<8x1xi1>
    %53 = vector.broadcast %52 : vector<8x1xi1> to vector<8x128xi1>
    %54 = arith.select %53, %49, %41 : vector<8x128xi1>, vector<8x128xf32>
    %c4_i32 = arith.constant 4 : i32
    %55 = arith.truncf %54 : vector<8x128xf32> to vector<8x128xbf16>
    %cst_15 = arith.constant dense<0.000000e+00> : vector<8x128xf32>
    %56 = tpu.matmul %55, %1, %cst_15 {dimension_numbers = #tpu.dot_dimension_numbers<[1], [0], [0], [1], [0, 0, 1, 1], [], []>} : vector<8x128xbf16>, vector<128x128xbf16>, vector<8x128xf32> -> vector<8x128xf32>
    %57 = arith.index_cast %c4_i32 : i32 to index
    %c0_16 = arith.constant 0 : index
    %c0_17 = arith.constant 0 : index
    %58 = vector.load %arg1[%57, %c0_16, %c0_17] : memref<8x8x128xbf16, #tpu.memory_space<vmem>>, vector<1x8x128xbf16>
    %59 = vector.shape_cast %58 : vector<1x8x128xbf16> to vector<8x128xbf16>
    %60 = arith.extf %59 : vector<8x128xbf16> to vector<8x128xf32>
    %61 = arith.addf %56, %60 : vector<8x128xf32>
    %62 = math.tanh %61 : vector<8x128xf32>
    %63 = vector.broadcast %c4_i32 : i32 to vector<8x1xi32>
    %64 = arith.cmpi sgt, %0, %63 : vector<8x1xi32>
    %65 = vector.shape_cast %64 : vector<8x1xi1> to vector<8x1xi1>
    %66 = vector.broadcast %65 : vector<8x1xi1> to vector<8x128xi1>
    %67 = arith.select %66, %62, %54 : vector<8x128xi1>, vector<8x128xf32>
    %c5_i32 = arith.constant 5 : i32
    %68 = arith.truncf %67 : vector<8x128xf32> to vector<8x128xbf16>
    %cst_18 = arith.constant dense<0.000000e+00> : vector<8x128xf32>
    %69 = tpu.matmul %68, %1, %cst_18 {dimension_numbers = #tpu.dot_dimension_numbers<[1], [0], [0], [1], [0, 0, 1, 1], [], []>} : vector<8x128xbf16>, vector<128x128xbf16>, vector<8x128xf32> -> vector<8x128xf32>
    %70 = arith.index_cast %c5_i32 : i32 to index
    %c0_19 = arith.constant 0 : index
    %c0_20 = arith.constant 0 : index
    %71 = vector.load %arg1[%70, %c0_19, %c0_20] : memref<8x8x128xbf16, #tpu.memory_space<vmem>>, vector<1x8x128xbf16>
    %72 = vector.shape_cast %71 : vector<1x8x128xbf16> to vector<8x128xbf16>
    %73 = arith.extf %72 : vector<8x128xbf16> to vector<8x128xf32>
    %74 = arith.addf %69, %73 : vector<8x128xf32>
    %75 = math.tanh %74 : vector<8x128xf32>
    %76 = vector.broadcast %c5_i32 : i32 to vector<8x1xi32>
    %77 = arith.cmpi sgt, %0, %76 : vector<8x1xi32>
    %78 = vector.shape_cast %77 : vector<8x1xi1> to vector<8x1xi1>
    %79 = vector.broadcast %78 : vector<8x1xi1> to vector<8x128xi1>
    %80 = arith.select %79, %75, %67 : vector<8x128xi1>, vector<8x128xf32>
    %c6_i32 = arith.constant 6 : i32
    %81 = arith.truncf %80 : vector<8x128xf32> to vector<8x128xbf16>
    %cst_21 = arith.constant dense<0.000000e+00> : vector<8x128xf32>
    %82 = tpu.matmul %81, %1, %cst_21 {dimension_numbers = #tpu.dot_dimension_numbers<[1], [0], [0], [1], [0, 0, 1, 1], [], []>} : vector<8x128xbf16>, vector<128x128xbf16>, vector<8x128xf32> -> vector<8x128xf32>
    %83 = arith.index_cast %c6_i32 : i32 to index
    %c0_22 = arith.constant 0 : index
    %c0_23 = arith.constant 0 : index
    %84 = vector.load %arg1[%83, %c0_22, %c0_23] : memref<8x8x128xbf16, #tpu.memory_space<vmem>>, vector<1x8x128xbf16>
    %85 = vector.shape_cast %84 : vector<1x8x128xbf16> to vector<8x128xbf16>
    %86 = arith.extf %85 : vector<8x128xbf16> to vector<8x128xf32>
    %87 = arith.addf %82, %86 : vector<8x128xf32>
    %88 = math.tanh %87 : vector<8x128xf32>
    %89 = vector.broadcast %c6_i32 : i32 to vector<8x1xi32>
    %90 = arith.cmpi sgt, %0, %89 : vector<8x1xi32>
    %91 = vector.shape_cast %90 : vector<8x1xi1> to vector<8x1xi1>
    %92 = vector.broadcast %91 : vector<8x1xi1> to vector<8x128xi1>
    %93 = arith.select %92, %88, %80 : vector<8x128xi1>, vector<8x128xf32>
    %c7_i32 = arith.constant 7 : i32
    %94 = arith.truncf %93 : vector<8x128xf32> to vector<8x128xbf16>
    %cst_24 = arith.constant dense<0.000000e+00> : vector<8x128xf32>
    %95 = tpu.matmul %94, %1, %cst_24 {dimension_numbers = #tpu.dot_dimension_numbers<[1], [0], [0], [1], [0, 0, 1, 1], [], []>} : vector<8x128xbf16>, vector<128x128xbf16>, vector<8x128xf32> -> vector<8x128xf32>
    %96 = arith.index_cast %c7_i32 : i32 to index
    %c0_25 = arith.constant 0 : index
    %c0_26 = arith.constant 0 : index
    %97 = vector.load %arg1[%96, %c0_25, %c0_26] : memref<8x8x128xbf16, #tpu.memory_space<vmem>>, vector<1x8x128xbf16>
    %98 = vector.shape_cast %97 : vector<1x8x128xbf16> to vector<8x128xbf16>
    %99 = arith.extf %98 : vector<8x128xbf16> to vector<8x128xf32>
    %100 = arith.addf %95, %99 : vector<8x128xf32>
    %101 = math.tanh %100 : vector<8x128xf32>
    %102 = vector.broadcast %c7_i32 : i32 to vector<8x1xi32>
    %103 = arith.cmpi sgt, %0, %102 : vector<8x1xi32>
    %104 = vector.shape_cast %103 : vector<8x1xi1> to vector<8x1xi1>
    %105 = vector.broadcast %104 : vector<8x1xi1> to vector<8x128xi1>
    %106 = arith.select %105, %101, %93 : vector<8x128xi1>, vector<8x128xf32>
    %c8_i32 = arith.constant 8 : i32
    %c0_27 = arith.constant 0 : index
    %c0_28 = arith.constant 0 : index
    %107 = vector.load %arg4[%c0_27, %c0_28] : memref<1x128xf32, #tpu.memory_space<vmem>>, vector<1x128xf32>
    %c0_29 = arith.constant 0 : index
    %c0_30 = arith.constant 0 : index
    %108 = vector.load %arg5[%c0_29, %c0_30] : memref<1x128xf32, #tpu.memory_space<vmem>>, vector<1x128xf32>
    %cst_31 = arith.constant dense<0.000000e+00> : vector<8xf32>
    %109 = vector.multi_reduction <add>, %106, %cst_31 [1] : vector<8x128xf32> to vector<8xf32>
    %110 = vector.shape_cast %109 : vector<8xf32> to vector<8x1xf32>
    %cst_32 = arith.constant 1.280000e+02 : f32
    %111 = vector.broadcast %cst_32 : f32 to vector<8x1xf32>
    %112 = arith.divf %110, %111 : vector<8x1xf32>
    %113 = vector.broadcast %112 : vector<8x1xf32> to vector<8x128xf32>
    %114 = arith.subf %106, %113 : vector<8x128xf32>
    %115 = arith.mulf %114, %114 : vector<8x128xf32>
    %cst_33 = arith.constant dense<0.000000e+00> : vector<8xf32>
    %116 = vector.multi_reduction <add>, %115, %cst_33 [1] : vector<8x128xf32> to vector<8xf32>
    %117 = vector.shape_cast %116 : vector<8xf32> to vector<8x1xf32>
    %cst_34 = arith.constant 1.270000e+02 : f32
    %118 = vector.broadcast %cst_34 : f32 to vector<8x1xf32>
    %119 = arith.divf %117, %118 : vector<8x1xf32>
    %120 = math.sqrt %119 : vector<8x1xf32>
    %cst_35 = arith.constant 1.000000e-03 : f32
    %121 = vector.broadcast %cst_35 : f32 to vector<8x1xf32>
    %122 = arith.addf %120, %121 : vector<8x1xf32>
    %123 = tpu.reciprocal %122 : vector<8x1xf32> -> vector<8x1xf32>
    %124 = vector.broadcast %112 : vector<8x1xf32> to vector<8x128xf32>
    %125 = arith.subf %106, %124 : vector<8x128xf32>
    %126 = vector.broadcast %123 : vector<8x1xf32> to vector<8x128xf32>
    %127 = arith.mulf %125, %126 : vector<8x128xf32>
    %128 = vector.broadcast %107 : vector<1x128xf32> to vector<8x128xf32>
    %129 = arith.mulf %127, %128 : vector<8x128xf32>
    %130 = vector.broadcast %108 : vector<1x128xf32> to vector<8x128xf32>
    %131 = arith.addf %129, %130 : vector<8x128xf32>
    %c0_36 = arith.constant 0 : index
    %c0_37 = arith.constant 0 : index
    %132 = vector.load %arg6[%c0_36, %c0_37] : memref<128x16xf32, #tpu.memory_space<vmem>>, vector<128x16xf32>
    %cst_38 = arith.constant dense<0.000000e+00> : vector<8x16xf32>
    %133 = tpu.matmul %131, %132, %cst_38 {dimension_numbers = #tpu.dot_dimension_numbers<[1], [0], [0], [1], [0, 0, 1, 1], [], []>} : vector<8x128xf32>, vector<128x16xf32>, vector<8x16xf32> -> vector<8x16xf32>
    %c0_39 = arith.constant 0 : index
    %c0_40 = arith.constant 0 : index
    %134 = vector.load %arg7[%c0_39, %c0_40] : memref<1x16xf32, #tpu.memory_space<vmem>>, vector<1x16xf32>
    %135 = vector.broadcast %134 : vector<1x16xf32> to vector<8x16xf32>
    %136 = arith.addf %133, %135 : vector<8x16xf32>
    %cst_41 = arith.constant 0.000000e+00 : f32
    %137 = vector.broadcast %cst_41 : f32 to vector<8x16xf32>
    %138 = arith.maximumf %136, %137 : vector<8x16xf32>
    %c0_42 = arith.constant 0 : index
    %c0_43 = arith.constant 0 : index
    %139 = vector.load %arg8[%c0_42, %c0_43] : memref<1x16xf32, #tpu.memory_space<vmem>>, vector<1x16xf32>
    %c0_44 = arith.constant 0 : index
    %c0_45 = arith.constant 0 : index
    %140 = vector.load %arg9[%c0_44, %c0_45] : memref<1x16xf32, #tpu.memory_space<vmem>>, vector<1x16xf32>
    %cst_46 = arith.constant dense<0.000000e+00> : vector<8xf32>
    %141 = vector.multi_reduction <add>, %138, %cst_46 [1] : vector<8x16xf32> to vector<8xf32>
    %142 = vector.shape_cast %141 : vector<8xf32> to vector<8x1xf32>
    %cst_47 = arith.constant 1.600000e+01 : f32
    %143 = vector.broadcast %cst_47 : f32 to vector<8x1xf32>
    %144 = arith.divf %142, %143 : vector<8x1xf32>
    %145 = vector.broadcast %144 : vector<8x1xf32> to vector<8x16xf32>
    %146 = arith.subf %138, %145 : vector<8x16xf32>
    %147 = arith.mulf %146, %146 : vector<8x16xf32>
    %cst_48 = arith.constant dense<0.000000e+00> : vector<8xf32>
    %148 = vector.multi_reduction <add>, %147, %cst_48 [1] : vector<8x16xf32> to vector<8xf32>
    %149 = vector.shape_cast %148 : vector<8xf32> to vector<8x1xf32>
    %cst_49 = arith.constant 1.500000e+01 : f32
    %150 = vector.broadcast %cst_49 : f32 to vector<8x1xf32>
    %151 = arith.divf %149, %150 : vector<8x1xf32>
    %152 = math.sqrt %151 : vector<8x1xf32>
    %cst_50 = arith.constant 1.000000e-03 : f32
    %153 = vector.broadcast %cst_50 : f32 to vector<8x1xf32>
    %154 = arith.addf %152, %153 : vector<8x1xf32>
    %155 = tpu.reciprocal %154 : vector<8x1xf32> -> vector<8x1xf32>
    %156 = vector.broadcast %144 : vector<8x1xf32> to vector<8x16xf32>
    %157 = arith.subf %138, %156 : vector<8x16xf32>
    %158 = vector.broadcast %155 : vector<8x1xf32> to vector<8x16xf32>
    %159 = arith.mulf %157, %158 : vector<8x16xf32>
    %160 = vector.broadcast %139 : vector<1x16xf32> to vector<8x16xf32>
    %161 = arith.mulf %159, %160 : vector<8x16xf32>
    %162 = vector.broadcast %140 : vector<1x16xf32> to vector<8x16xf32>
    %163 = arith.addf %161, %162 : vector<8x16xf32>
    %c0_51 = arith.constant 0 : index
    %c0_52 = arith.constant 0 : index
    %164 = vector.load %arg10[%c0_51, %c0_52] : memref<16x16xf32, #tpu.memory_space<vmem>>, vector<16x16xf32>
    %cst_53 = arith.constant dense<0.000000e+00> : vector<8x16xf32>
    %165 = tpu.matmul %163, %164, %cst_53 {dimension_numbers = #tpu.dot_dimension_numbers<[1], [0], [0], [1], [0, 0, 1, 1], [], []>} : vector<8x16xf32>, vector<16x16xf32>, vector<8x16xf32> -> vector<8x16xf32>
    %c0_54 = arith.constant 0 : index
    %c0_55 = arith.constant 0 : index
    %166 = vector.load %arg11[%c0_54, %c0_55] : memref<1x16xf32, #tpu.memory_space<vmem>>, vector<1x16xf32>
    %167 = vector.broadcast %166 : vector<1x16xf32> to vector<8x16xf32>
    %168 = arith.addf %165, %167 : vector<8x16xf32>
    %cst_56 = arith.constant 0.000000e+00 : f32
    %169 = vector.broadcast %cst_56 : f32 to vector<8x16xf32>
    %170 = arith.maximumf %168, %169 : vector<8x16xf32>
    %c0_57 = arith.constant 0 : index
    %c0_58 = arith.constant 0 : index
    %171 = vector.load %arg12[%c0_57, %c0_58] : memref<1x16xf32, #tpu.memory_space<vmem>>, vector<1x16xf32>
    %c0_59 = arith.constant 0 : index
    %c0_60 = arith.constant 0 : index
    %172 = vector.load %arg13[%c0_59, %c0_60] : memref<1x16xf32, #tpu.memory_space<vmem>>, vector<1x16xf32>
    %cst_61 = arith.constant dense<0.000000e+00> : vector<8xf32>
    %173 = vector.multi_reduction <add>, %170, %cst_61 [1] : vector<8x16xf32> to vector<8xf32>
    %174 = vector.shape_cast %173 : vector<8xf32> to vector<8x1xf32>
    %cst_62 = arith.constant 1.600000e+01 : f32
    %175 = vector.broadcast %cst_62 : f32 to vector<8x1xf32>
    %176 = arith.divf %174, %175 : vector<8x1xf32>
    %177 = vector.broadcast %176 : vector<8x1xf32> to vector<8x16xf32>
    %178 = arith.subf %170, %177 : vector<8x16xf32>
    %179 = arith.mulf %178, %178 : vector<8x16xf32>
    %cst_63 = arith.constant dense<0.000000e+00> : vector<8xf32>
    %180 = vector.multi_reduction <add>, %179, %cst_63 [1] : vector<8x16xf32> to vector<8xf32>
    %181 = vector.shape_cast %180 : vector<8xf32> to vector<8x1xf32>
    %cst_64 = arith.constant 1.500000e+01 : f32
    %182 = vector.broadcast %cst_64 : f32 to vector<8x1xf32>
    %183 = arith.divf %181, %182 : vector<8x1xf32>
    %184 = math.sqrt %183 : vector<8x1xf32>
    %cst_65 = arith.constant 1.000000e-03 : f32
    %185 = vector.broadcast %cst_65 : f32 to vector<8x1xf32>
    %186 = arith.addf %184, %185 : vector<8x1xf32>
    %187 = tpu.reciprocal %186 : vector<8x1xf32> -> vector<8x1xf32>
    %188 = vector.broadcast %176 : vector<8x1xf32> to vector<8x16xf32>
    %189 = arith.subf %170, %188 : vector<8x16xf32>
    %190 = vector.broadcast %187 : vector<8x1xf32> to vector<8x16xf32>
    %191 = arith.mulf %189, %190 : vector<8x16xf32>
    %192 = vector.broadcast %171 : vector<1x16xf32> to vector<8x16xf32>
    %193 = arith.mulf %191, %192 : vector<8x16xf32>
    %194 = vector.broadcast %172 : vector<1x16xf32> to vector<8x16xf32>
    %195 = arith.addf %193, %194 : vector<8x16xf32>
    %c0_66 = arith.constant 0 : index
    %c0_67 = arith.constant 0 : index
    %196 = vector.load %arg14[%c0_66, %c0_67] : memref<16x128xf32, #tpu.memory_space<vmem>>, vector<16x128xf32>
    %cst_68 = arith.constant dense<0.000000e+00> : vector<8x128xf32>
    %197 = tpu.matmul %195, %196, %cst_68 {dimension_numbers = #tpu.dot_dimension_numbers<[1], [0], [0], [1], [0, 0, 1, 1], [], []>} : vector<8x16xf32>, vector<16x128xf32>, vector<8x128xf32> -> vector<8x128xf32>
    %c0_69 = arith.constant 0 : index
    %c0_70 = arith.constant 0 : index
    %198 = vector.load %arg15[%c0_69, %c0_70] : memref<1x128xf32, #tpu.memory_space<vmem>>, vector<1x128xf32>
    %199 = vector.broadcast %198 : vector<1x128xf32> to vector<8x128xf32>
    %200 = arith.addf %197, %199 : vector<8x128xf32>
    %c0_71 = arith.constant 0 : index
    %c0_72 = arith.constant 0 : index
    %201 = vector.load %arg16[%c0_71, %c0_72] : memref<8x128xf32, #tpu.memory_space<vmem>>, vector<8x128xf32>
    tpu.vector_store %arg16[%c0_71, %c0_72], %200 {strides = array<i32>} : memref<8x128xf32, #tpu.memory_space<vmem>>, vector<8x128xf32>,
    return
  }
  func.func @transform_0(%arg0: i32) -> (i32, i32, i32) {
    %c0_i32 = arith.constant 0 : i32
    %c0_i32_0 = arith.constant 0 : i32
    %c0_i32_1 = arith.constant 0 : i32
    return %c0_i32, %arg0, %c0_i32_0 : i32, i32, i32
  }
  func.func @transform_1(%arg0: i32) -> (i32, i32) {
    %c0_i32 = arith.constant 0 : i32
    %c0_i32_0 = arith.constant 0 : i32
    return %arg0, %c0_i32 : i32, i32
  }
  func.func @transform_2(%arg0: i32) -> (i32, i32) {
    %c0_i32 = arith.constant 0 : i32
    %c0_i32_0 = arith.constant 0 : i32
    %c0_i32_1 = arith.constant 0 : i32
    return %c0_i32, %c0_i32_0 : i32, i32
  }
  func.func @transform_3(%arg0: i32) -> (i32, i32) {
    %c0_i32 = arith.constant 0 : i32
    %c0_i32_0 = arith.constant 0 : i32
    %c0_i32_1 = arith.constant 0 : i32
    return %c0_i32, %c0_i32_0 : i32, i32
  }
  func.func @transform_4(%arg0: i32) -> (i32, i32) {
    %c0_i32 = arith.constant 0 : i32
    %c0_i32_0 = arith.constant 0 : i32
    %c0_i32_1 = arith.constant 0 : i32
    return %c0_i32, %c0_i32_0 : i32, i32
  }
  func.func @transform_5(%arg0: i32) -> (i32, i32) {
    %c0_i32 = arith.constant 0 : i32
    %c0_i32_0 = arith.constant 0 : i32
    %c0_i32_1 = arith.constant 0 : i32
    return %c0_i32, %c0_i32_0 : i32, i32
  }
  func.func @transform_6(%arg0: i32) -> (i32, i32) {
    %c0_i32 = arith.constant 0 : i32
    %c0_i32_0 = arith.constant 0 : i32
    %c0_i32_1 = arith.constant 0 : i32
    return %c0_i32, %c0_i32_0 : i32, i32
  }
  func.func @transform_7(%arg0: i32) -> (i32, i32) {
    %c0_i32 = arith.constant 0 : i32
    %c0_i32_0 = arith.constant 0 : i32
    %c0_i32_1 = arith.constant 0 : i32
    return %c0_i32, %c0_i32_0 : i32, i32
  }
  func.func @transform_8(%arg0: i32) -> (i32, i32) {
    %c0_i32 = arith.constant 0 : i32
    %c0_i32_0 = arith.constant 0 : i32
    %c0_i32_1 = arith.constant 0 : i32
    return %c0_i32, %c0_i32_0 : i32, i32
  }
  func.func @transform_9(%arg0: i32) -> (i32, i32) {
    %c0_i32 = arith.constant 0 : i32
    %c0_i32_0 = arith.constant 0 : i32
    %c0_i32_1 = arith.constant 0 : i32
    return %c0_i32, %c0_i32_0 : i32, i32
  }
  func.func @transform_10(%arg0: i32) -> (i32, i32) {
    %c0_i32 = arith.constant 0 : i32
    %c0_i32_0 = arith.constant 0 : i32
    %c0_i32_1 = arith.constant 0 : i32
    return %c0_i32, %c0_i32_0 : i32, i32
  }
  func.func @transform_11(%arg0: i32) -> (i32, i32) {
    %c0_i32 = arith.constant 0 : i32
    %c0_i32_0 = arith.constant 0 : i32
    %c0_i32_1 = arith.constant 0 : i32
    return %c0_i32, %c0_i32_0 : i32, i32
  }
  func.func @transform_12(%arg0: i32) -> (i32, i32) {
    %c0_i32 = arith.constant 0 : i32
    %c0_i32_0 = arith.constant 0 : i32
    %c0_i32_1 = arith.constant 0 : i32
    return %c0_i32, %c0_i32_0 : i32, i32
  }
  func.func @transform_13(%arg0: i32) -> (i32, i32) {
    %c0_i32 = arith.constant 0 : i32
    %c0_i32_0 = arith.constant 0 : i32
    %c0_i32_1 = arith.constant 0 : i32
    return %c0_i32, %c0_i32_0 : i32, i32
  }
  func.func @transform_14(%arg0: i32) -> (i32, i32) {
    %c0_i32 = arith.constant 0 : i32
    %c0_i32_0 = arith.constant 0 : i32
    %c0_i32_1 = arith.constant 0 : i32
    return %c0_i32, %c0_i32_0 : i32, i32
  }
  func.func @transform_15(%arg0: i32) -> (i32, i32) {
    %c0_i32 = arith.constant 0 : i32
    %c0_i32_0 = arith.constant 0 : i32
    return %arg0, %c0_i32 : i32, i32
  }
}

</mosaic_0001>

<llo_original>
// kernel: model_forward.1
$region0: #{model_forward.1}
  #allocation0 [shape = 'u32[]', space=smem, size = 0x4, offset = 0x4, fixed_abs, tag = 'smem constant byte address 0x4 - core index']
  #allocation1 [shape = 'u32[144,128]{1,0:T(1,128)}', space=vmem, size = 0x12000, scoped, tag = 'internal scratch']
  %s0 = inlined_call_operand.vmem [shape: bf16[8,16,128], index: 0, kind: input, shape index: {}]
  %s1 = inlined_call_operand.vmem [shape: s32[16,1], index: 1, kind: input, shape index: {}]
  %s2 = inlined_call_operand.vmem [shape: bf16[128,128], index: 2, kind: input, shape index: {}]
  %s3 = inlined_call_operand.vmem [shape: f32[1,128], index: 3, kind: input, shape index: {}]
  %s4 = inlined_call_operand.vmem [shape: f32[1,128], index: 4, kind: input, shape index: {}]
  %s5 = inlined_call_operand.vmem [shape: f32[128,16], index: 5, kind: input, shape index: {}]
  %s6 = inlined_call_operand.vmem [shape: f32[1,16], index: 6, kind: input, shape index: {}]
  %s7 = inlined_call_operand.vmem [shape: f32[1,16], index: 7, kind: input, shape index: {}]
  %s8 = inlined_call_operand.vmem [shape: f32[1,16], index: 8, kind: input, shape index: {}]
  %s9 = inlined_call_operand.vmem [shape: f32[16,16], index: 9, kind: input, shape index: {}]
  %s10 = inlined_call_operand.vmem [shape: f32[1,16], index: 10, kind: input, shape index: {}]
  %s11 = inlined_call_operand.vmem [shape: f32[1,16], index: 11, kind: input, shape index: {}]
  %s12 = inlined_call_operand.vmem [shape: f32[1,16], index: 12, kind: input, shape index: {}]
  %s13 = inlined_call_operand.vmem [shape: f32[16,128], index: 13, kind: input, shape index: {}]
  %s14 = inlined_call_operand.vmem [shape: f32[1,128], index: 14, kind: input, shape index: {}]
  %s15 = inlined_call_operand.vmem [shape: f32[16,128], index: 15, kind: output, shape index: {}]
  %s16 = sld [smem:[#allocation0]]
  $region134: #{model_forward.1} parent=0
    _
  %s18 = ssub.s32 1, %s16
  %s19 = scalar_select 0, %s18, %s16
  $region1: #{model_forward.1} parent=0
    #allocation2 [shape = 'u8[32768]{0}', space=vmem, size = 0x8000, scoped, tag = 'input window, operand 0']
    loop: start=0, step=1, limit=4
    $region2: #{model_forward.1} parent=1 // loop_pre_header
      _
    $region3: #{model_forward.1} parent=1 // loop_header
      %s21 = sphi 0, %s25
      %p22 = scmp.ge.s32.totalorder %s21, 4
      %s31 = sphi 0, %s33
      %s34 = sphi 0, %s31
      %s35 = sphi 0, %s34
      %s51 = sphi 0, %s35
      %s57 = sphi 0, %s59
      %s60 = sphi 0, %s57
      %s61 = sphi 0, %s60
      %s77 = sphi 0, %s61
      %s81 = sphi 0, %s81
      %s83 = sphi 0, %s81
      %s84 = sphi 0, %s83
      %s98 = sphi 0, %s84
      %s102 = sphi 0, %s102
      %s104 = sphi 0, %s102
      %s105 = sphi 0, %s104
      %s119 = sphi 0, %s105
      %s123 = sphi 0, %s123
      %s125 = sphi 0, %s123
      %s126 = sphi 0, %s125
      %s140 = sphi 0, %s126
      %s144 = sphi 0, %s144
      %s146 = sphi 0, %s144
      %s147 = sphi 0, %s146
      %s161 = sphi 0, %s147
      %s165 = sphi 0, %s165
      %s167 = sphi 0, %s165
      %s168 = sphi 0, %s167
      %s182 = sphi 0, %s168
      %s186 = sphi 0, %s186
      %s188 = sphi 0, %s186
      %s189 = sphi 0, %s188
      %s203 = sphi 0, %s189
      %s207 = sphi 0, %s207
      %s209 = sphi 0, %s207
      %s210 = sphi 0, %s209
      %s224 = sphi 0, %s210
      %s228 = sphi 0, %s228
      %s230 = sphi 0, %s228
      %s231 = sphi 0, %s230
      %s245 = sphi 0, %s231
      %s249 = sphi 0, %s249
      %s251 = sphi 0, %s249
      %s252 = sphi 0, %s251
      %s266 = sphi 0, %s252
      %s270 = sphi 0, %s270
      %s272 = sphi 0, %s270
      %s273 = sphi 0, %s272
      %s287 = sphi 0, %s273
      %s291 = sphi 0, %s291
      %s293 = sphi 0, %s291
      %s294 = sphi 0, %s293
      %s308 = sphi 0, %s294
      %s312 = sphi 0, %s312
      %s314 = sphi 0, %s312
      %s315 = sphi 0, %s314
      %s329 = sphi 0, %s315
      %s333 = sphi 0, %s333
      %s335 = sphi 0, %s333
      %s336 = sphi 0, %s335
      %s350 = sphi 0, %s336
      %s356 = sphi 0, %s358
      %s359 = sphi 0, %s356
      %s360 = sphi 0, %s359
      %s376 = sphi 0, %s360
    $region4: #{model_forward.1} parent=1 // loop_header_branch
      %24 = sbr.rel (%p22) target = $region8
    $region5: #{model_forward.1} parent=1 // loop_body
      %s26 = ssub.s32 %s21, 1
      %s27 = ssub.s32 %s21, 2
      %s28 = sadd.s32 %s21, 1
      %s29 = ssub.s32 %s21, %s28
      %p30 = scmp.eq.s32.totalorder %s29, 0
      %s32 = sadd.s32 %s31, 1
      %s33 = scalar_select %p30, %s31, %s32
      %p36 = pneg %p30
      %p37 = scmp.eq.s32.totalorder %s21, 1
      %p38 = por %p36, %p37
      %p39 = scmp.ne.s32.totalorder %s31, %s34
      %p40 = scmp.eq.s32.totalorder %s21, 0
      %p41 = por %p39, %p40
      %p42 = scmp.ne.s32.totalorder %s31, %s34
      %p43 = scmp.eq.s32.totalorder %s26, 1
      %p44 = por %p42, %p43
      %p45 = scmp.ne.s32.totalorder %s34, %s35
      %p46 = scmp.eq.s32.totalorder %s26, 0
      %p47 = por %p45, %p46
      %p48 = scmp.ne.s32.totalorder %s34, %s35
      %p49 = scmp.eq.s32.totalorder %s27, 1
      %p50 = por %p48, %p49
      %p52 = scmp.ne.s32.totalorder %s35, %s51
      %p53 = scmp.eq.s32.totalorder %s27, 0
      %p54 = por %p52, %p53
      %s55 = ssub.s32 %s21, %s28
      %p56 = scmp.eq.s32.totalorder %s55, 0
      %s58 = sadd.s32 %s57, 1
      %s59 = scalar_select %p56, %s57, %s58
      %p62 = pneg %p56
      %p63 = scmp.eq.s32.totalorder %s21, 1
      %p64 = por %p62, %p63
      %p65 = scmp.ne.s32.totalorder %s57, %s60
      %p66 = scmp.eq.s32.totalorder %s21, 0
      %p67 = por %p65, %p66
      %p68 = scmp.ne.s32.totalorder %s57, %s60
      %p69 = scmp.eq.s32.totalorder %s26, 1
      %p70 = por %p68, %p69
      %p71 = scmp.ne.s32.totalorder %s60, %s61
      %p72 = scmp.eq.s32.totalorder %s26, 0
      %p73 = por %p71, %p72
      %p74 = scmp.ne.s32.totalorder %s60, %s61
      %p75 = scmp.eq.s32.totalorder %s27, 1
      %p76 = por %p74, %p75
      %p78 = scmp.ne.s32.totalorder %s61, %s77
      %p79 = scmp.eq.s32.totalorder %s27, 0
      %p80 = por %p78, %p79
      %s82 = sadd.s32 %s81, 1
      %p85 = scmp.eq.s32.totalorder %s21, 1
      %p86 = scmp.ne.s32.totalorder %s81, %s83
      %p87 = scmp.eq.s32.totalorder %s21, 0
      %p88 = por %p86, %p87
      %p89 = scmp.ne.s32.totalorder %s81, %s83
      %p90 = scmp.eq.s32.totalorder %s26, 1
      %p91 = por %p89, %p90
      %p92 = scmp.ne.s32.totalorder %s83, %s84
      %p93 = scmp.eq.s32.totalorder %s26, 0
      %p94 = por %p92, %p93
      %p95 = scmp.ne.s32.totalorder %s83, %s84
      %p96 = scmp.eq.s32.totalorder %s27, 1
      %p97 = por %p95, %p96
      %p99 = scmp.ne.s32.totalorder %s84, %s98
      %p100 = scmp.eq.s32.totalorder %s27, 0
      %p101 = por %p99, %p100
      %s103 = sadd.s32 %s102, 1
      %p106 = scmp.eq.s32.totalorder %s21, 1
      %p107 = scmp.ne.s32.totalorder %s102, %s104
      %p108 = scmp.eq.s32.totalorder %s21, 0
      %p109 = por %p107, %p108
      %p110 = scmp.ne.s32.totalorder %s102, %s104
      %p111 = scmp.eq.s32.totalorder %s26, 1
      %p112 = por %p110, %p111
      %p113 = scmp.ne.s32.totalorder %s104, %s105
      %p114 = scmp.eq.s32.totalorder %s26, 0
      %p115 = por %p113, %p114
      %p116 = scmp.ne.s32.totalorder %s104, %s105
      %p117 = scmp.eq.s32.totalorder %s27, 1
      %p118 = por %p116, %p117
      %p120 = scmp.ne.s32.totalorder %s105, %s119
      %p121 = scmp.eq.s32.totalorder %s27, 0
      %p122 = por %p120, %p121
      %s124 = sadd.s32 %s123, 1
      %p127 = scmp.eq.s32.totalorder %s21, 1
      %p128 = scmp.ne.s32.totalorder %s123, %s125
      %p129 = scmp.eq.s32.totalorder %s21, 0
      %p130 = por %p128, %p129
      %p131 = scmp.ne.s32.totalorder %s123, %s125
      %p132 = scmp.eq.s32.totalorder %s26, 1
      %p133 = por %p131, %p132
      %p134 = scmp.ne.s32.totalorder %s125, %s126
      %p135 = scmp.eq.s32.totalorder %s26, 0
      %p136 = por %p134, %p135
      %p137 = scmp.ne.s32.totalorder %s125, %s126
      %p138 = scmp.eq.s32.totalorder %s27, 1
      %p139 = por %p137, %p138
      %p141 = scmp.ne.s32.totalorder %s126, %s140
      %p142 = scmp.eq.s32.totalorder %s27, 0
      %p143 = por %p141, %p142
      %s145 = sadd.s32 %s144, 1
      %p148 = scmp.eq.s32.totalorder %s21, 1
      %p149 = scmp.ne.s32.totalorder %s144, %s146
      %p150 = scmp.eq.s32.totalorder %s21, 0
      %p151 = por %p149, %p150
      %p152 = scmp.ne.s32.totalorder %s144, %s146
      %p153 = scmp.eq.s32.totalorder %s26, 1
      %p154 = por %p152, %p153
      %p155 = scmp.ne.s32.totalorder %s146, %s147
      %p156 = scmp.eq.s32.totalorder %s26, 0
      %p157 = por %p155, %p156
      %p158 = scmp.ne.s32.totalorder %s146, %s147
      %p159 = scmp.eq.s32.totalorder %s27, 1
      %p160 = por %p158, %p159
      %p162 = scmp.ne.s32.totalorder %s147, %s161
      %p163 = scmp.eq.s32.totalorder %s27, 0
      %p164 = por %p162, %p163
      %s166 = sadd.s32 %s165, 1
      %p169 = scmp.eq.s32.totalorder %s21, 1
      %p170 = scmp.ne.s32.totalorder %s165, %s167
      %p171 = scmp.eq.s32.totalorder %s21, 0
      %p172 = por %p170, %p171
      %p173 = scmp.ne.s32.totalorder %s165, %s167
      %p174 = scmp.eq.s32.totalorder %s26, 1
      %p175 = por %p173, %p174
      %p176 = scmp.ne.s32.totalorder %s167, %s168
      %p177 = scmp.eq.s32.totalorder %s26, 0
      %p178 = por %p176, %p177
      %p179 = scmp.ne.s32.totalorder %s167, %s168
      %p180 = scmp.eq.s32.totalorder %s27, 1
      %p181 = por %p179, %p180
      %p183 = scmp.ne.s32.totalorder %s168, %s182
      %p184 = scmp.eq.s32.totalorder %s27, 0
      %p185 = por %p183, %p184
      %s187 = sadd.s32 %s186, 1
      %p190 = scmp.eq.s32.totalorder %s21, 1
      %p191 = scmp.ne.s32.totalorder %s186, %s188
      %p192 = scmp.eq.s32.totalorder %s21, 0
      %p193 = por %p191, %p192
      %p194 = scmp.ne.s32.totalorder %s186, %s188
      %p195 = scmp.eq.s32.totalorder %s26, 1
      %p196 = por %p194, %p195
      %p197 = scmp.ne.s32.totalorder %s188, %s189
      %p198 = scmp.eq.s32.totalorder %s26, 0
      %p199 = por %p197, %p198
      %p200 = scmp.ne.s32.totalorder %s188, %s189
      %p201 = scmp.eq.s32.totalorder %s27, 1
      %p202 = por %p200, %p201
      %p204 = scmp.ne.s32.totalorder %s189, %s203
      %p205 = scmp.eq.s32.totalorder %s27, 0
      %p206 = por %p204, %p205
      %s208 = sadd.s32 %s207, 1
      %p211 = scmp.eq.s32.totalorder %s21, 1
      %p212 = scmp.ne.s32.totalorder %s207, %s209
      %p213 = scmp.eq.s32.totalorder %s21, 0
      %p214 = por %p212, %p213
      %p215 = scmp.ne.s32.totalorder %s207, %s209
      %p216 = scmp.eq.s32.totalorder %s26, 1
      %p217 = por %p215, %p216
      %p218 = scmp.ne.s32.totalorder %s209, %s210
      %p219 = scmp.eq.s32.totalorder %s26, 0
      %p220 = por %p218, %p219
      %p221 = scmp.ne.s32.totalorder %s209, %s210
      %p222 = scmp.eq.s32.totalorder %s27, 1
      %p223 = por %p221, %p222
      %p225 = scmp.ne.s32.totalorder %s210, %s224
      %p226 = scmp.eq.s32.totalorder %s27, 0
      %p227 = por %p225, %p226
      %s229 = sadd.s32 %s228, 1
      %p232 = scmp.eq.s32.totalorder %s21, 1
      %p233 = scmp.ne.s32.totalorder %s228, %s230
      %p234 = scmp.eq.s32.totalorder %s21, 0
      %p235 = por %p233, %p234
      %p236 = scmp.ne.s32.totalorder %s228, %s230
      %p237 = scmp.eq.s32.totalorder %s26, 1
      %p238 = por %p236, %p237
      %p239 = scmp.ne.s32.totalorder %s230, %s231
      %p240 = scmp.eq.s32.totalorder %s26, 0
      %p241 = por %p239, %p240
      %p242 = scmp.ne.s32.totalorder %s230, %s231
      %p243 = scmp.eq.s32.totalorder %s27, 1
      %p244 = por %p242, %p243
      %p246 = scmp.ne.s32.totalorder %s231, %s245
      %p247 = scmp.eq.s32.totalorder %s27, 0
      %p248 = por %p246, %p247
      %s250 = sadd.s32 %s249, 1
      %p253 = scmp.eq.s32.totalorder %s21, 1
      %p254 = scmp.ne.s32.totalorder %s249, %s251
      %p255 = scmp.eq.s32.totalorder %s21, 0
      %p256 = por %p254, %p255
      %p257 = scmp.ne.s32.totalorder %s249, %s251
      %p258 = scmp.eq.s32.totalorder %s26, 1
      %p259 = por %p257, %p258
      %p260 = scmp.ne.s32.totalorder %s251, %s252
      %p261 = scmp.eq.s32.totalorder %s26, 0
      %p262 = por %p260, %p261
      %p263 = scmp.ne.s32.totalorder %s251, %s252
      %p264 = scmp.eq.s32.totalorder %s27, 1
      %p265 = por %p263, %p264
      %p267 = scmp.ne.s32.totalorder %s252, %s266
      %p268 = scmp.eq.s32.totalorder %s27, 0
      %p269 = por %p267, %p268
      %s271 = sadd.s32 %s270, 1
      %p274 = scmp.eq.s32.totalorder %s21, 1
      %p275 = scmp.ne.s32.totalorder %s270, %s272
      %p276 = scmp.eq.s32.totalorder %s21, 0
      %p277 = por %p275, %p276
      %p278 = scmp.ne.s32.totalorder %s270, %s272
      %p279 = scmp.eq.s32.totalorder %s26, 1
      %p280 = por %p278, %p279
      %p281 = scmp.ne.s32.totalorder %s272, %s273
      %p282 = scmp.eq.s32.totalorder %s26, 0
      %p283 = por %p281, %p282
      %p284 = scmp.ne.s32.totalorder %s272, %s273
      %p285 = scmp.eq.s32.totalorder %s27, 1
      %p286 = por %p284, %p285
      %p288 = scmp.ne.s32.totalorder %s273, %s287
      %p289 = scmp.eq.s32.totalorder %s27, 0
      %p290 = por %p288, %p289
      %s292 = sadd.s32 %s291, 1
      %p295 = scmp.eq.s32.totalorder %s21, 1
      %p296 = scmp.ne.s32.totalorder %s291, %s293
      %p297 = scmp.eq.s32.totalorder %s21, 0
      %p298 = por %p296, %p297
      %p299 = scmp.ne.s32.totalorder %s291, %s293
      %p300 = scmp.eq.s32.totalorder %s26, 1
      %p301 = por %p299, %p300
      %p302 = scmp.ne.s32.totalorder %s293, %s294
      %p303 = scmp.eq.s32.totalorder %s26, 0
      %p304 = por %p302, %p303
      %p305 = scmp.ne.s32.totalorder %s293, %s294
      %p306 = scmp.eq.s32.totalorder %s27, 1
      %p307 = por %p305, %p306
      %p309 = scmp.ne.s32.totalorder %s294, %s308
      %p310 = scmp.eq.s32.totalorder %s27, 0
      %p311 = por %p309, %p310
      %s313 = sadd.s32 %s312, 1
      %p316 = scmp.eq.s32.totalorder %s21, 1
      %p317 = scmp.ne.s32.totalorder %s312, %s314
      %p318 = scmp.eq.s32.totalorder %s21, 0
      %p319 = por %p317, %p318
      %p320 = scmp.ne.s32.totalorder %s312, %s314
      %p321 = scmp.eq.s32.totalorder %s26, 1
      %p322 = por %p320, %p321
      %p323 = scmp.ne.s32.totalorder %s314, %s315
      %p324 = scmp.eq.s32.totalorder %s26, 0
      %p325 = por %p323, %p324
      %p326 = scmp.ne.s32.totalorder %s314, %s315
      %p327 = scmp.eq.s32.totalorder %s27, 1
      %p328 = por %p326, %p327
      %p330 = scmp.ne.s32.totalorder %s315, %s329
      %p331 = scmp.eq.s32.totalorder %s27, 0
      %p332 = por %p330, %p331
      %s334 = sadd.s32 %s333, 1
      %p337 = scmp.eq.s32.totalorder %s21, 1
      %p338 = scmp.ne.s32.totalorder %s333, %s335
      %p339 = scmp.eq.s32.totalorder %s21, 0
      %p340 = por %p338, %p339
      %p341 = scmp.ne.s32.totalorder %s333, %s335
      %p342 = scmp.eq.s32.totalorder %s26, 1
      %p343 = por %p341, %p342
      %p344 = scmp.ne.s32.totalorder %s335, %s336
      %p345 = scmp.eq.s32.totalorder %s26, 0
      %p346 = por %p344, %p345
      %p347 = scmp.ne.s32.totalorder %s335, %s336
      %p348 = scmp.eq.s32.totalorder %s27, 1
      %p349 = por %p347, %p348
      %p351 = scmp.ne.s32.totalorder %s336, %s350
      %p352 = scmp.eq.s32.totalorder %s27, 0
      %p353 = por %p351, %p352
      %s354 = ssub.s32 %s21, %s28
      %p355 = scmp.eq.s32.totalorder %s354, 0
      %s357 = sadd.s32 %s356, 1
      %s358 = scalar_select %p355, %s356, %s357
      %p361 = pneg %p355
      %p362 = scmp.eq.s32.totalorder %s21, 1
      %p363 = por %p361, %p362
      %p364 = scmp.ne.s32.totalorder %s356, %s359
      %p365 = scmp.eq.s32.totalorder %s21, 0
      %p366 = por %p364, %p365
      %p367 = scmp.ne.s32.totalorder %s356, %s359
      %p368 = scmp.eq.s32.totalorder %s26, 1
      %p369 = por %p367, %p368
      %p370 = scmp.ne.s32.totalorder %s359, %s360
      %p371 = scmp.eq.s32.totalorder %s26, 0
      %p372 = por %p370, %p371
      %p373 = scmp.ne.s32.totalorder %s359, %s360
      %p374 = scmp.eq.s32.totalorder %s27, 1
      %p375 = por %p373, %p374
      %p377 = scmp.ne.s32.totalorder %s360, %s376
      %p378 = scmp.eq.s32.totalorder %s27, 0
      %p379 = por %p377, %p378
      %p380 = scmp.le.s32.totalorder 1, %s21
      %p381 = scmp.lt.s32.totalorder %s21, 3
      %p382 = pnand %p380, %p381
      %p383 = pneg %p382
      // Predicated region
      $region9: #{model_forward.1} parent=5 // pred_check
        _
      $region10: #{model_forward.1} parent=5 // pred_check_branch
        %385 = sbr.rel (%p382) target = $region12
      $region11: #{model_forward.1} parent=5 // pred_region
        %s386 = ssub.s32 %s21, 1
        // Predicated region
        $region13: #{model_forward.1} parent=11 // pred_check
          %p387 = pneg %p94
        $region14: #{model_forward.1} parent=11 // pred_check_branch
          %389 = sbr.rel (%p387) target = $region16
        $region15: #{model_forward.1} parent=11 // pred_region
          _
        $region16: #{model_forward.1} parent=11 // pred_fallthru
          _
        // Predicated region
        $region17: #{model_forward.1} parent=11 // pred_check
          %p390 = pneg %p115
        $region18: #{model_forward.1} parent=11 // pred_check_branch
          %392 = sbr.rel (%p390) target = $region20
        $region19: #{model_forward.1} parent=11 // pred_region
          _
        $region20: #{model_forward.1} parent=11 // pred_fallthru
          _
        // Predicated region
        $region21: #{model_forward.1} parent=11 // pred_check
          %p393 = pneg %p136
        $region22: #{model_forward.1} parent=11 // pred_check_branch
          %395 = sbr.rel (%p393) target = $region24
        $region23: #{model_forward.1} parent=11 // pred_region
          _
        $region24: #{model_forward.1} parent=11 // pred_fallthru
          _
        // Predicated region
        $region25: #{model_forward.1} parent=11 // pred_check
          %p396 = pneg %p157
        $region26: #{model_forward.1} parent=11 // pred_check_branch
          %398 = sbr.rel (%p396) target = $region28
        $region27: #{model_forward.1} parent=11 // pred_region
          _
        $region28: #{model_forward.1} parent=11 // pred_fallthru
          _
        // Predicated region
        $region29: #{model_forward.1} parent=11 // pred_check
          %p399 = pneg %p178
        $region30: #{model_forward.1} parent=11 // pred_check_branch
          %401 = sbr.rel (%p399) target = $region32
        $region31: #{model_forward.1} parent=11 // pred_region
          _
        $region32: #{model_forward.1} parent=11 // pred_fallthru
          _
        // Predicated region
        $region33: #{model_forward.1} parent=11 // pred_check
          %p402 = pneg %p199
        $region34: #{model_forward.1} parent=11 // pred_check_branch
          %404 = sbr.rel (%p402) target = $region36
        $region35: #{model_forward.1} parent=11 // pred_region
          _
        $region36: #{model_forward.1} parent=11 // pred_fallthru
          _
        // Predicated region
        $region37: #{model_forward.1} parent=11 // pred_check
          %p405 = pneg %p220
        $region38: #{model_forward.1} parent=11 // pred_check_branch
          %407 = sbr.rel (%p405) target = $region40
        $region39: #{model_forward.1} parent=11 // pred_region
          _
        $region40: #{model_forward.1} parent=11 // pred_fallthru
          _
        // Predicated region
        $region41: #{model_forward.1} parent=11 // pred_check
          %p408 = pneg %p241
        $region42: #{model_forward.1} parent=11 // pred_check_branch
          %410 = sbr.rel (%p408) target = $region44
        $region43: #{model_forward.1} parent=11 // pred_region
          _
        $region44: #{model_forward.1} parent=11 // pred_fallthru
          _
        // Predicated region
        $region45: #{model_forward.1} parent=11 // pred_check
          %p411 = pneg %p262
        $region46: #{model_forward.1} parent=11 // pred_check_branch
          %413 = sbr.rel (%p411) target = $region48
        $region47: #{model_forward.1} parent=11 // pred_region
          _
        $region48: #{model_forward.1} parent=11 // pred_fallthru
          _
        // Predicated region
        $region49: #{model_forward.1} parent=11 // pred_check
          %p414 = pneg %p283
        $region50: #{model_forward.1} parent=11 // pred_check_branch
          %416 = sbr.rel (%p414) target = $region52
        $region51: #{model_forward.1} parent=11 // pred_region
          _
        $region52: #{model_forward.1} parent=11 // pred_fallthru
          _
        // Predicated region
        $region53: #{model_forward.1} parent=11 // pred_check
          %p417 = pneg %p304
        $region54: #{model_forward.1} parent=11 // pred_check_branch
          %419 = sbr.rel (%p417) target = $region56
        $region55: #{model_forward.1} parent=11 // pred_region
          _
        $region56: #{model_forward.1} parent=11 // pred_fallthru
          _
        // Predicated region
        $region57: #{model_forward.1} parent=11 // pred_check
          %p420 = pneg %p325
        $region58: #{model_forward.1} parent=11 // pred_check_branch
          %422 = sbr.rel (%p420) target = $region60
        $region59: #{model_forward.1} parent=11 // pred_region
          _
        $region60: #{model_forward.1} parent=11 // pred_fallthru
          _
        // Predicated region
        $region61: #{model_forward.1} parent=11 // pred_check
          %p423 = pneg %p346
        $region62: #{model_forward.1} parent=11 // pred_check_branch
          %425 = sbr.rel (%p423) target = $region64
        $region63: #{model_forward.1} parent=11 // pred_region
          _
        $region64: #{model_forward.1} parent=11 // pred_fallthru
          _
      $region12: #{model_forward.1} parent=5 // pred_fallthru
        _
      %p426 = scmp.lt.s32.totalorder %s21, 2
      // Predicated region
      $region65: #{model_forward.1} parent=5 // pred_check
        %p427 = pneg %p426
      $region66: #{model_forward.1} parent=5 // pred_check_branch
        %429 = sbr.rel (%p427) target = $region68
      $region67: #{model_forward.1} parent=5 // pred_region
        // Predicated region
        $region69: #{model_forward.1} parent=67 // pred_check
          %p430 = pneg %p41
        $region70: #{model_forward.1} parent=67 // pred_check_branch
          %432 = sbr.rel (%p430) target = $region72
        $region71: #{model_forward.1} parent=67 // pred_region
          %s433 = sand.u32 %s31, 1
          %s434 = sand.u32 %s31, 1
          %s435 = smul.addr %s434, 32
          %s436 = scalar_lea.vmem [#allocation2], %s435
          %s437 = smul.addr %s21, 4
          %s438 = scalar_lea.vmem %s0, %s437
          // Predicated region
          $region73: #{model_forward.1} parent=71 // pred_check
            _
          $region74: #{model_forward.1} parent=71 // pred_check_branch
            %440 = sbr.rel (0) target = $region76
          $region75: #{model_forward.1} parent=71 // pred_region
            // Predicated region
            $region77: #{model_forward.1} parent=75 // pred_check
              _
            $region78: #{model_forward.1} parent=75 // pred_check_branch
              %442 = sbr.rel target = $region80
            $region79: #{model_forward.1} parent=75 // pred_region
              // Predicated region
              $region92: #{model_forward.1} parent=79 // pred_check
                _
              $region93: #{model_forward.1} parent=79 // pred_check_branch
                %472 = sbr.rel (0) target = $region95
              $region94: #{model_forward.1} parent=79 // pred_region
                loop: start=0, step=1, limit=1
                $region96: #{model_forward.1} parent=94 // loop_pre_header
                  _
                $region97: #{model_forward.1} parent=94 // loop_header
                  %s474 = sphi 0, %s478
                  %p475 = scmp.ge.s32.totalorder %s474, 1
                  %s479 = sphi %s438, %s438
                  %s480 = sphi %s436, %s436
                $region98: #{model_forward.1} parent=94 // loop_header_branch
                  %477 = sbr.rel (%p475) target = $region102
                $region99: #{model_forward.1} parent=94 // loop_body
                  _
                $region100: #{model_forward.1} parent=94 // loop_footer
                  %s478 = sadd.s32 1, %s474
                $region101: #{model_forward.1} parent=94 // loop_footer_branch
                  %473 = sbr.rel target = $region97
                $region102: #{model_forward.1} parent=94 // loop_exit
                  _
                %s482 = ssub.s32 16, 1
                loop: start=0, step=1, limit=1
                $region103: #{model_forward.1} parent=94 // loop_pre_header
                  _
                $region104: #{model_forward.1} parent=94 // loop_header
                  %s484 = sphi 0, %s488
                  %p485 = scmp.ge.s32.totalorder %s484, 1
                  %s489 = sphi %s438, %s438
                  %s490 = sphi %s436, %s436
                $region105: #{model_forward.1} parent=94 // loop_header_branch
                  %487 = sbr.rel (%p485) target = $region109
                $region106: #{model_forward.1} parent=94 // loop_body
                  %v491 = vld [vmem:[%s489] sm:%s482]
                  %492 = vst [vmem:[%s490] sm:%s482] %v491
                  %v493 = vld [vmem:[%s489 + $0x8] sm:%s482]
                  %494 = vst [vmem:[%s490 + $0x4] sm:%s482] %v493
                  %v495 = vld [vmem:[%s489 + $0x10] sm:%s482]
                  %496 = vst [vmem:[%s490 + $0x8] sm:%s482] %v495
                  %v497 = vld [vmem:[%s489 + $0x18] sm:%s482]
                  %498 = vst [vmem:[%s490 + $0xc] sm:%s482] %v497
                  %v499 = vld [vmem:[%s489 + $0x20] sm:%s482]
                  %500 = vst [vmem:[%s490 + $0x10] sm:%s482] %v499
                  %v501 = vld [vmem:[%s489 + $0x28] sm:%s482]
                  %502 = vst [vmem:[%s490 + $0x14] sm:%s482] %v501
                  %v503 = vld [vmem:[%s489 + $0x30] sm:%s482]
                  %504 = vst [vmem:[%s490 + $0x18] sm:%s482] %v503
                  %v505 = vld [vmem:[%s489 + $0x38] sm:%s482]
                  %506 = vst [vmem:[%s490 + $0x1c] sm:%s482] %v505
                $region107: #{model_forward.1} parent=94 // loop_footer
                  %s488 = sadd.s32 1, %s484
                $region108: #{model_forward.1} parent=94 // loop_footer_branch
                  %483 = sbr.rel target = $region104
                $region109: #{model_forward.1} parent=94 // loop_exit
                  _
              $region95: #{model_forward.1} parent=79 // pred_fallthru
                _
            $region80: #{model_forward.1} parent=75 // pred_fallthru
              _
            // Predicated region
            $region81: #{model_forward.1} parent=75 // pred_check
              _
            $region82: #{model_forward.1} parent=75 // pred_check_branch
              %444 = sbr.rel (0) target = $region84
            $region83: #{model_forward.1} parent=75 // pred_region
              %s446 = ssub.s32 16, 1
              loop: start=0, step=1, limit=1
              $region85: #{model_forward.1} parent=83 // loop_pre_header
                _
              $region86: #{model_forward.1} parent=83 // loop_header
                %s448 = sphi 0, %s452
                %p449 = scmp.ge.s32.totalorder %s448, 1
                %s453 = sphi %s438, %s438
                %s454 = sphi %s436, %s436
              $region87: #{model_forward.1} parent=83 // loop_header_branch
                %451 = sbr.rel (%p449) target = $region91
              $region88: #{model_forward.1} parent=83 // loop_body
                %v455 = vld [vmem:[%s453] sm:%s446]
                %456 = vst [vmem:[%s454] sm:%s446] %v455
                %v457 = vld [vmem:[%s453 + $0x8] sm:%s446]
                %458 = vst [vmem:[%s454 + $0x4] sm:%s446] %v457
                %v459 = vld [vmem:[%s453 + $0x10] sm:%s446]
                %460 = vst [vmem:[%s454 + $0x8] sm:%s446] %v459
                %v461 = vld [vmem:[%s453 + $0x18] sm:%s446]
                %462 = vst [vmem:[%s454 + $0xc] sm:%s446] %v461
                %v463 = vld [vmem:[%s453 + $0x20] sm:%s446]
                %464 = vst [vmem:[%s454 + $0x10] sm:%s446] %v463
                %v465 = vld [vmem:[%s453 + $0x28] sm:%s446]
                %466 = vst [vmem:[%s454 + $0x14] sm:%s446] %v465
                %v467 = vld [vmem:[%s453 + $0x30] sm:%s446]
                %468 = vst [vmem:[%s454 + $0x18] sm:%s446] %v467
                %v469 = vld [vmem:[%s453 + $0x38] sm:%s446]
                %470 = vst [vmem:[%s454 + $0x1c] sm:%s446] %v469
              $region89: #{model_forward.1} parent=83 // loop_footer
                %s452 = sadd.s32 1, %s448
              $region90: #{model_forward.1} parent=83 // loop_footer_branch
                %447 = sbr.rel target = $region86
              $region91: #{model_forward.1} parent=83 // loop_exit
                _
            $region84: #{model_forward.1} parent=75 // pred_fallthru
              _
          $region76: #{model_forward.1} parent=71 // pred_fallthru
            _
          %507 = vnop
        $region72: #{model_forward.1} parent=67 // pred_fallthru
          _
        // Predicated region
        $region110: #{model_forward.1} parent=67 // pred_check
          %p508 = pneg %p67
        $region111: #{model_forward.1} parent=67 // pred_check_branch
          %510 = sbr.rel (%p508) target = $region113
        $region112: #{model_forward.1} parent=67 // pred_region
          %p511 = scmp.lt.s32.totalorder %s21, 1
          %s512 = scalar_select %p511, %s21, 1
          %s513 = smul.addr %s512, 8
          %s514 = scalar_lea.vmem %s1, %s513
        $region113: #{model_forward.1} parent=67 // pred_fallthru
          _
      $region68: #{model_forward.1} parent=5 // pred_fallthru
        _
      %p515 = scmp.le.s32.totalorder 1, %s21
      %p516 = scmp.lt.s32.totalorder %s21, 3
      %p517 = pnand %p515, %p516
      %p518 = pneg %p517
      // Predicated region
      $region114: #{model_forward.1} parent=5 // pred_check
        _
      $region115: #{model_forward.1} parent=5 // pred_check_branch
        %520 = sbr.rel (%p517) target = $region117
      $region116: #{model_forward.1} parent=5 // pred_region
        %s521 = ssub.s32 %s21, 1
        %s522 = sand.u32 %s34, 1
        %s523 = sand.u32 %s34, 1
        %s524 = smul.addr %s523, 32
        %s525 = scalar_lea.vmem [#allocation2], %s524
        // Predicated region
        $region118: #{model_forward.1} parent=116 // pred_check
          %p526 = pneg %p47
        $region119: #{model_forward.1} parent=116 // pred_check_branch
          %528 = sbr.rel (%p526) target = $region121
        $region120: #{model_forward.1} parent=116 // pred_region
          _
        $region121: #{model_forward.1} parent=116 // pred_fallthru
          _
        %s529 = sand.u32 %s34, 1
        %s530 = sand.u32 %s34, 1
        %s531 = smul.addr %s530, 32
        %s532 = scalar_lea.vmem [#allocation2], %s531
        %p533 = pneg %p47
        %p534 = pneg %p44
        %p535 = scmp.lt.s32.totalorder %s26, 1
        %s536 = scalar_select %p535, %s26, 1
        %s537 = smul.addr %s536, 8
        %s538 = scalar_lea.vmem %s1, %s537
        %p539 = pneg %p73
        %p540 = pneg %p70
        %p541 = pneg %p94
        %p542 = pneg %p91
        %p543 = pneg %p115
        %p544 = pneg %p112
        %p545 = pneg %p136
        %p546 = pneg %p133
        %p547 = pneg %p157
        %p548 = pneg %p154
        %p549 = pneg %p178
        %p550 = pneg %p175
        %p551 = pneg %p199
        %p552 = pneg %p196
        %p553 = pneg %p220
        %p554 = pneg %p217
        %p555 = pneg %p241
        %p556 = pneg %p238
        %p557 = pneg %p262
        %p558 = pneg %p259
        %p559 = pneg %p283
        %p560 = pneg %p280
        %p561 = pneg %p304
        %p562 = pneg %p301
        %p563 = pneg %p325
        %p564 = pneg %p322
        %p565 = pneg %p346
        %p566 = pneg %p343
        %p567 = pneg %p372
        %p568 = pneg %p369
        %p569 = scmp.lt.s32.totalorder %s26, 1
        %s570 = scalar_select %p569, %s26, 1
        %s571 = smul.addr %s570, 8
        %s572 = scalar_lea.vmem %s15, %s571
        %p573 = scmp.lt.s32.totalorder %s26, 1
        %s574 = scalar_select %p573, %s26, 1
        %s575 = smul.addr %s574, 8
        %s576 = scalar_lea.vmem %s1, %s575
        %p577 = scmp.lt.s32.totalorder %s26, 1
        %s578 = scalar_select %p577, %s26, 1
        %s579 = smul.addr %s578, 8
        %s580 = scalar_lea.vmem %s15, %s579
        %v582 = vld [vmem:[%s576] sm:$0xff]
        %v583 = vld [vmem:[%s2] sm:$0xf]
        %v584 = vld [vmem:[%s2 + $0x4] sm:$0xf]
        %v585 = vld [vmem:[%s2 + $0x8] sm:$0xf]
        %v586 = vld [vmem:[%s2 + $0xc] sm:$0xf]
        %v587 = vld [vmem:[%s2 + $0x10] sm:$0xf]
        %v588 = vld [vmem:[%s2 + $0x14] sm:$0xf]
        %v589 = vld [vmem:[%s2 + $0x18] sm:$0xf]
        %v590 = vld [vmem:[%s2 + $0x1c] sm:$0xf]
        %v591 = vld [vmem:[%s2 + $0x20] sm:$0xf]
        %v592 = vld [vmem:[%s2 + $0x24] sm:$0xf]
        %v593 = vld [vmem:[%s2 + $0x28] sm:$0xf]
        %v594 = vld [vmem:[%s2 + $0x2c] sm:$0xf]
        %v595 = vld [vmem:[%s2 + $0x30] sm:$0xf]
        %v596 = vld [vmem:[%s2 + $0x34] sm:$0xf]
        %v597 = vld [vmem:[%s2 + $0x38] sm:$0xf]
        %v598 = vld [vmem:[%s2 + $0x3c] sm:$0xf]
        %v599 = vld [vmem:[%s525] sm:$0xf]
        %v600 = vunpack.c.l.bf16 %v599
        %v617 = vunpack.c.l.b16 %v583
        %v618 = vunpack.c.l.b16 %v584
        %v619 = vunpack.c.l.b16 %v585
        %v620 = vunpack.c.l.b16 %v586
        %v621 = vunpack.c.l.b16 %v587
        %v622 = vunpack.c.l.b16 %v588
        %v623 = vunpack.c.l.b16 %v589
        %v624 = vunpack.c.l.b16 %v590
        %v625 = vunpack.c.l.b16 %v591
        %v626 = vunpack.c.l.b16 %v592
        %v627 = vunpack.c.l.b16 %v593
        %v628 = vunpack.c.l.b16 %v594
        %v629 = vunpack.c.l.b16 %v595
        %v630 = vunpack.c.l.b16 %v596
        %v631 = vunpack.c.l.b16 %v597
        %v632 = vunpack.c.l.b16 %v598
        %v633 = vpack.c.b16 %v618, %v617
        %v634 = vpack.c.b16 %v620, %v619
        %v635 = vpack.c.b16 %v622, %v621
        %v636 = vpack.c.b16 %v624, %v623
        %v637 = vpack.c.b16 %v626, %v625
        %v638 = vpack.c.b16 %v628, %v627
        %v639 = vpack.c.b16 %v630, %v629
        %v640 = vpack.c.b16 %v632, %v631
        %649 = vmatprep.subr.bf16.mxu0 0
        %650 = vmatpush1.bf16.msra.mxu0 %v640
        %651 = vmatprep.subr.bf16.mxu0 0
        %652 = vmatpush1.bf16.msra.mxu0 %v639
        %653 = vmatprep.subr.bf16.mxu0 0
        %654 = vmatpush1.bf16.msra.mxu0 %v638
        %655 = vmatprep.subr.bf16.mxu0 0
        %656 = vmatpush1.bf16.msra.mxu0 %v637
        %657 = vmatprep.subr.bf16.mxu0 0
        %658 = vmatpush1.bf16.msra.mxu0 %v636
        %659 = vmatprep.subr.bf16.mxu0 0
        %660 = vmatpush1.bf16.msra.mxu0 %v635
        %661 = vmatprep.subr.bf16.mxu0 0
        %662 = vmatpush1.bf16.msra.mxu0 %v634
        %663 = vmatprep.subr.bf16.mxu0 0
        %664 = vmatpush1.bf16.msra.mxu0 %v633
        %665 = vmatprep.subr.bf16.mxu0 0
        %666 = vmatpush2.bf16.msra.mxu0 0
        %667 = vmatprep.subr.bf16.mxu0 0
        %668 = vmatpush2.bf16.msra.mxu0 0
        %669 = vmatprep.subr.bf16.mxu0 0
        %670 = vmatpush2.bf16.msra.mxu0 0
        %671 = vmatprep.subr.bf16.mxu0 0
        %672 = vmatpush2.bf16.msra.mxu0 0
        %673 = vmatprep.subr.bf16.mxu0 0
        %674 = vmatpush2.bf16.msra.mxu0 0
        %675 = vmatprep.subr.bf16.mxu0 0
        %676 = vmatpush2.bf16.msra.mxu0 0
        %677 = vmatprep.subr.bf16.mxu0 0
        %678 = vmatpush2.bf16.msra.mxu0 0
        %679 = vmatprep.subr.bf16.mxu0 0
        %680 = vmatpush2.bf16.msra.mxu0 0
        %681 = vmatprep.mubr.bf16.mxu0 0
        %682 = vmatmul.mubr.bf16.gmra.mxu0 0
        %v683 = vpop.f32.mrf.mxu0
        %v684 = vadd.f32 %v600, %v683
        %v685 = vpop.f32.mrf.mxu0
        %v686 = vpop.f32.mrf.mxu0
        %v687 = vpop.f32.mrf.mxu0
        %688 = vdwg.mxu0
        %v689 = vtanh.pop %v684
        %vm690 = vcmp.gt.s32.totalorder %v582, 0
        %v691 = vsel %vm690, 1, 0
        %692 = vset.pattern.permute.xlu0 0
        %693 = vperm.xlu0 %692, %v691
        %v694 = vpop.permute.xlu0 %693
        %vm695 = vcmp.eq.s32.totalorder %v694, 1
        %v696 = vsel %vm695, %v689, 0.0
        %v697 = vpack.c.bf16 %v696, %v696
        %s698 = scalar_lea.vmem %s525, 4 [#allocation2]
        %v699 = vld [vmem:[%s698] sm:$0xf]
        %v700 = vunpack.c.l.bf16 %v699
        %701 = vmatprep.subr.bf16.mxu0 0
        %702 = vmatpush1.bf16.msra.mxu0 %v640
        %703 = vmatprep.subr.bf16.mxu0 0
        %704 = vmatpush1.bf16.msra.mxu0 %v639
        %705 = vmatprep.subr.bf16.mxu0 0
        %706 = vmatpush1.bf16.msra.mxu0 %v638
        %707 = vmatprep.subr.bf16.mxu0 0
        %708 = vmatpush1.bf16.msra.mxu0 %v637
        %709 = vmatprep.subr.bf16.mxu0 0
        %710 = vmatpush1.bf16.msra.mxu0 %v636
        %711 = vmatprep.subr.bf16.mxu0 0
        %712 = vmatpush1.bf16.msra.mxu0 %v635
        %713 = vmatprep.subr.bf16.mxu0 0
        %714 = vmatpush1.bf16.msra.mxu0 %v634
        %715 = vmatprep.subr.bf16.mxu0 0
        %716 = vmatpush1.bf16.msra.mxu0 %v633
        %717 = vmatprep.subr.bf16.mxu0 0
        %718 = vmatpush2.bf16.msra.mxu0 0
        %719 = vmatprep.subr.bf16.mxu0 0
        %720 = vmatpush2.bf16.msra.mxu0 0
        %721 = vmatprep.subr.bf16.mxu0 0
        %722 = vmatpush2.bf16.msra.mxu0 0
        %723 = vmatprep.subr.bf16.mxu0 0
        %724 = vmatpush2.bf16.msra.mxu0 0
        %725 = vmatprep.subr.bf16.mxu0 0
        %726 = vmatpush2.bf16.msra.mxu0 0
        %727 = vmatprep.subr.bf16.mxu0 0
        %728 = vmatpush2.bf16.msra.mxu0 0
        %729 = vmatprep.subr.bf16.mxu0 0
        %730 = vmatpush2.bf16.msra.mxu0 0
        %731 = vmatprep.subr.bf16.mxu0 0
        %732 = vmatpush2.bf16.msra.mxu0 0
        %733 = vmatprep.mubr.bf16.mxu0 0
        %734 = vmatmul.mubr.bf16.gmra.mxu0 %v697
        %v735 = vpop.f32.mrf.mxu0
        %v736 = vadd.f32 %v700, %v735
        %v737 = vpop.f32.mrf.mxu0
        %v738 = vpop.f32.mrf.mxu0
        %v739 = vpop.f32.mrf.mxu0
        %740 = vdwg.mxu0
        %v741 = vtanh.pop %v736
        %vm742 = vcmp.gt.s32.totalorder %v582, 1
        %v743 = vsel %vm742, 1, 0
        %744 = vset.pattern.permute.xlu0 0
        %745 = vperm.xlu0 %744, %v743
        %v746 = vpop.permute.xlu0 %745
        %vm747 = vcmp.eq.s32.totalorder %v746, 1
        %v748 = vsel %vm747, %v741, %v696
        %v749 = vpack.c.bf16 %v748, %v748
        %s750 = scalar_lea.vmem %s525, 8 [#allocation2]
        %v751 = vld [vmem:[%s750] sm:$0xf]
        %v752 = vunpack.c.l.bf16 %v751
        %753 = vmatprep.subr.bf16.mxu0 0
        %754 = vmatpush1.bf16.msra.mxu0 %v640
        %755 = vmatprep.subr.bf16.mxu0 0
        %756 = vmatpush1.bf16.msra.mxu0 %v639
        %757 = vmatprep.subr.bf16.mxu0 0
        %758 = vmatpush1.bf16.msra.mxu0 %v638
        %759 = vmatprep.subr.bf16.mxu0 0
        %760 = vmatpush1.bf16.msra.mxu0 %v637
        %761 = vmatprep.subr.bf16.mxu0 0
        %762 = vmatpush1.bf16.msra.mxu0 %v636
        %763 = vmatprep.subr.bf16.mxu0 0
        %764 = vmatpush1.bf16.msra.mxu0 %v635
        %765 = vmatprep.subr.bf16.mxu0 0
        %766 = vmatpush1.bf16.msra.mxu0 %v634
        %767 = vmatprep.subr.bf16.mxu0 0
        %768 = vmatpush1.bf16.msra.mxu0 %v633
        %769 = vmatprep.subr.bf16.mxu0 0
        %770 = vmatpush2.bf16.msra.mxu0 0
        %771 = vmatprep.subr.bf16.mxu0 0
        %772 = vmatpush2.bf16.msra.mxu0 0
        %773 = vmatprep.subr.bf16.mxu0 0
        %774 = vmatpush2.bf16.msra.mxu0 0
        %775 = vmatprep.subr.bf16.mxu0 0
        %776 = vmatpush2.bf16.msra.mxu0 0
        %777 = vmatprep.subr.bf16.mxu0 0
        %778 = vmatpush2.bf16.msra.mxu0 0
        %779 = vmatprep.subr.bf16.mxu0 0
        %780 = vmatpush2.bf16.msra.mxu0 0
        %781 = vmatprep.subr.bf16.mxu0 0
        %782 = vmatpush2.bf16.msra.mxu0 0
        %783 = vmatprep.subr.bf16.mxu0 0
        %784 = vmatpush2.bf16.msra.mxu0 0
        %785 = vmatprep.mubr.bf16.mxu0 0
        %786 = vmatmul.mubr.bf16.gmra.mxu0 %v749
        %v787 = vpop.f32.mrf.mxu0
        %v788 = vadd.f32 %v752, %v787
        %v789 = vpop.f32.mrf.mxu0
        %v790 = vpop.f32.mrf.mxu0
        %v791 = vpop.f32.mrf.mxu0
        %792 = vdwg.mxu0
        %v793 = vtanh.pop %v788
        %vm794 = vcmp.gt.s32.totalorder %v582, 2
        %v795 = vsel %vm794, 1, 0
        %796 = vset.pattern.permute.xlu0 0
        %797 = vperm.xlu0 %796, %v795
        %v798 = vpop.permute.xlu0 %797
        %vm799 = vcmp.eq.s32.totalorder %v798, 1
        %v800 = vsel %vm799, %v793, %v748
        %v801 = vpack.c.bf16 %v800, %v800
        %s802 = scalar_lea.vmem %s525, 12 [#allocation2]
        %v803 = vld [vmem:[%s802] sm:$0xf]
        %v804 = vunpack.c.l.bf16 %v803
        %805 = vmatprep.subr.bf16.mxu0 0
        %806 = vmatpush1.bf16.msra.mxu0 %v640
        %807 = vmatprep.subr.bf16.mxu0 0
        %808 = vmatpush1.bf16.msra.mxu0 %v639
        %809 = vmatprep.subr.bf16.mxu0 0
        %810 = vmatpush1.bf16.msra.mxu0 %v638
        %811 = vmatprep.subr.bf16.mxu0 0
        %812 = vmatpush1.bf16.msra.mxu0 %v637
        %813 = vmatprep.subr.bf16.mxu0 0
        %814 = vmatpush1.bf16.msra.mxu0 %v636
        %815 = vmatprep.subr.bf16.mxu0 0
        %816 = vmatpush1.bf16.msra.mxu0 %v635
        %817 = vmatprep.subr.bf16.mxu0 0
        %818 = vmatpush1.bf16.msra.mxu0 %v634
        %819 = vmatprep.subr.bf16.mxu0 0
        %820 = vmatpush1.bf16.msra.mxu0 %v633
        %821 = vmatprep.subr.bf16.mxu0 0
        %822 = vmatpush2.bf16.msra.mxu0 0
        %823 = vmatprep.subr.bf16.mxu0 0
        %824 = vmatpush2.bf16.msra.mxu0 0
        %825 = vmatprep.subr.bf16.mxu0 0
        %826 = vmatpush2.bf16.msra.mxu0 0
        %827 = vmatprep.subr.bf16.mxu0 0
        %828 = vmatpush2.bf16.msra.mxu0 0
        %829 = vmatprep.subr.bf16.mxu0 0
        %830 = vmatpush2.bf16.msra.mxu0 0
        %831 = vmatprep.subr.bf16.mxu0 0
        %832 = vmatpush2.bf16.msra.mxu0 0
        %833 = vmatprep.subr.bf16.mxu0 0
        %834 = vmatpush2.bf16.msra.mxu0 0
        %835 = vmatprep.subr.bf16.mxu0 0
        %836 = vmatpush2.bf16.msra.mxu0 0
        %837 = vmatprep.mubr.bf16.mxu0 0
        %838 = vmatmul.mubr.bf16.gmra.mxu0 %v801
        %v839 = vpop.f32.mrf.mxu0
        %v840 = vadd.f32 %v804, %v839
        %v841 = vpop.f32.mrf.mxu0
        %v842 = vpop.f32.mrf.mxu0
        %v843 = vpop.f32.mrf.mxu0
        %844 = vdwg.mxu0
        %v845 = vtanh.pop %v840
        %vm846 = vcmp.gt.s32.totalorder %v582, 3
        %v847 = vsel %vm846, 1, 0
        %848 = vset.pattern.permute.xlu0 0
        %849 = vperm.xlu0 %848, %v847
        %v850 = vpop.permute.xlu0 %849
        %vm851 = vcmp.eq.s32.totalorder %v850, 1
        %v852 = vsel %vm851, %v845, %v800
        %v853 = vpack.c.bf16 %v852, %v852
        %s854 = scalar_lea.vmem %s525, 16 [#allocation2]
        %v855 = vld [vmem:[%s854] sm:$0xf]
        %v856 = vunpack.c.l.bf16 %v855
        %857 = vmatprep.subr.bf16.mxu0 0
        %858 = vmatpush1.bf16.msra.mxu0 %v640
        %859 = vmatprep.subr.bf16.mxu0 0
        %860 = vmatpush1.bf16.msra.mxu0 %v639
        %861 = vmatprep.subr.bf16.mxu0 0
        %862 = vmatpush1.bf16.msra.mxu0 %v638
        %863 = vmatprep.subr.bf16.mxu0 0
        %864 = vmatpush1.bf16.msra.mxu0 %v637
        %865 = vmatprep.subr.bf16.mxu0 0
        %866 = vmatpush1.bf16.msra.mxu0 %v636
        %867 = vmatprep.subr.bf16.mxu0 0
        %868 = vmatpush1.bf16.msra.mxu0 %v635
        %869 = vmatprep.subr.bf16.mxu0 0
        %870 = vmatpush1.bf16.msra.mxu0 %v634
        %871 = vmatprep.subr.bf16.mxu0 0
        %872 = vmatpush1.bf16.msra.mxu0 %v633
        %873 = vmatprep.subr.bf16.mxu0 0
        %874 = vmatpush2.bf16.msra.mxu0 0
        %875 = vmatprep.subr.bf16.mxu0 0
        %876 = vmatpush2.bf16.msra.mxu0 0
        %877 = vmatprep.subr.bf16.mxu0 0
        %878 = vmatpush2.bf16.msra.mxu0 0
        %879 = vmatprep.subr.bf16.mxu0 0
        %880 = vmatpush2.bf16.msra.mxu0 0
        %881 = vmatprep.subr.bf16.mxu0 0
        %882 = vmatpush2.bf16.msra.mxu0 0
        %883 = vmatprep.subr.bf16.mxu0 0
        %884 = vmatpush2.bf16.msra.mxu0 0
        %885 = vmatprep.subr.bf16.mxu0 0
        %886 = vmatpush2.bf16.msra.mxu0 0
        %887 = vmatprep.subr.bf16.mxu0 0
        %888 = vmatpush2.bf16.msra.mxu0 0
        %889 = vmatprep.mubr.bf16.mxu0 0
        %890 = vmatmul.mubr.bf16.gmra.mxu0 %v853
        %v891 = vpop.f32.mrf.mxu0
        %v892 = vadd.f32 %v856, %v891
        %v893 = vpop.f32.mrf.mxu0
        %v894 = vpop.f32.mrf.mxu0
        %v895 = vpop.f32.mrf.mxu0
        %896 = vdwg.mxu0
        %v897 = vtanh.pop %v892
        %vm898 = vcmp.gt.s32.totalorder %v582, 4
        %v899 = vsel %vm898, 1, 0
        %900 = vset.pattern.permute.xlu0 0
        %901 = vperm.xlu0 %900, %v899
        %v902 = vpop.permute.xlu0 %901
        %vm903 = vcmp.eq.s32.totalorder %v902, 1
        %v904 = vsel %vm903, %v897, %v852
        %v905 = vpack.c.bf16 %v904, %v904
        %s906 = scalar_lea.vmem %s525, 20 [#allocation2]
        %v907 = vld [vmem:[%s906] sm:$0xf]
        %v908 = vunpack.c.l.bf16 %v907
        %909 = vmatprep.subr.bf16.mxu0 0
        %910 = vmatpush1.bf16.msra.mxu0 %v640
        %911 = vmatprep.subr.bf16.mxu0 0
        %912 = vmatpush1.bf16.msra.mxu0 %v639
        %913 = vmatprep.subr.bf16.mxu0 0
        %914 = vmatpush1.bf16.msra.mxu0 %v638
        %915 = vmatprep.subr.bf16.mxu0 0
        %916 = vmatpush1.bf16.msra.mxu0 %v637
        %917 = vmatprep.subr.bf16.mxu0 0
        %918 = vmatpush1.bf16.msra.mxu0 %v636
        %919 = vmatprep.subr.bf16.mxu0 0
        %920 = vmatpush1.bf16.msra.mxu0 %v635
        %921 = vmatprep.subr.bf16.mxu0 0
        %922 = vmatpush1.bf16.msra.mxu0 %v634
        %923 = vmatprep.subr.bf16.mxu0 0
        %924 = vmatpush1.bf16.msra.mxu0 %v633
        %925 = vmatprep.subr.bf16.mxu0 0
        %926 = vmatpush2.bf16.msra.mxu0 0
        %927 = vmatprep.subr.bf16.mxu0 0
        %928 = vmatpush2.bf16.msra.mxu0 0
        %929 = vmatprep.subr.bf16.mxu0 0
        %930 = vmatpush2.bf16.msra.mxu0 0
        %931 = vmatprep.subr.bf16.mxu0 0
        %932 = vmatpush2.bf16.msra.mxu0 0
        %933 = vmatprep.subr.bf16.mxu0 0
        %934 = vmatpush2.bf16.msra.mxu0 0
        %935 = vmatprep.subr.bf16.mxu0 0
        %936 = vmatpush2.bf16.msra.mxu0 0
        %937 = vmatprep.subr.bf16.mxu0 0
        %938 = vmatpush2.bf16.msra.mxu0 0
        %939 = vmatprep.subr.bf16.mxu0 0
        %940 = vmatpush2.bf16.msra.mxu0 0
        %941 = vmatprep.mubr.bf16.mxu0 0
        %942 = vmatmul.mubr.bf16.gmra.mxu0 %v905
        %v943 = vpop.f32.mrf.mxu0
        %v944 = vadd.f32 %v908, %v943
        %v945 = vpop.f32.mrf.mxu0
        %v946 = vpop.f32.mrf.mxu0
        %v947 = vpop.f32.mrf.mxu0
        %948 = vdwg.mxu0
        %v949 = vtanh.pop %v944
        %vm950 = vcmp.gt.s32.totalorder %v582, 5
        %v951 = vsel %vm950, 1, 0
        %952 = vset.pattern.permute.xlu0 0
        %953 = vperm.xlu0 %952, %v951
        %v954 = vpop.permute.xlu0 %953
        %vm955 = vcmp.eq.s32.totalorder %v954, 1
        %v956 = vsel %vm955, %v949, %v904
        %v957 = vpack.c.bf16 %v956, %v956
        %s958 = scalar_lea.vmem %s525, 24 [#allocation2]
        %v959 = vld [vmem:[%s958] sm:$0xf]
        %v960 = vunpack.c.l.bf16 %v959
        %961 = vmatprep.subr.bf16.mxu0 0
        %962 = vmatpush1.bf16.msra.mxu0 %v640
        %963 = vmatprep.subr.bf16.mxu0 0
        %964 = vmatpush1.bf16.msra.mxu0 %v639
        %965 = vmatprep.subr.bf16.mxu0 0
        %966 = vmatpush1.bf16.msra.mxu0 %v638
        %967 = vmatprep.subr.bf16.mxu0 0
        %968 = vmatpush1.bf16.msra.mxu0 %v637
        %969 = vmatprep.subr.bf16.mxu0 0
        %970 = vmatpush1.bf16.msra.mxu0 %v636
        %971 = vmatprep.subr.bf16.mxu0 0
        %972 = vmatpush1.bf16.msra.mxu0 %v635
        %973 = vmatprep.subr.bf16.mxu0 0
        %974 = vmatpush1.bf16.msra.mxu0 %v634
        %975 = vmatprep.subr.bf16.mxu0 0
        %976 = vmatpush1.bf16.msra.mxu0 %v633
        %977 = vmatprep.subr.bf16.mxu0 0
        %978 = vmatpush2.bf16.msra.mxu0 0
        %979 = vmatprep.subr.bf16.mxu0 0
        %980 = vmatpush2.bf16.msra.mxu0 0
        %981 = vmatprep.subr.bf16.mxu0 0
        %982 = vmatpush2.bf16.msra.mxu0 0
        %983 = vmatprep.subr.bf16.mxu0 0
        %984 = vmatpush2.bf16.msra.mxu0 0
        %985 = vmatprep.subr.bf16.mxu0 0
        %986 = vmatpush2.bf16.msra.mxu0 0
        %987 = vmatprep.subr.bf16.mxu0 0
        %988 = vmatpush2.bf16.msra.mxu0 0
        %989 = vmatprep.subr.bf16.mxu0 0
        %990 = vmatpush2.bf16.msra.mxu0 0
        %991 = vmatprep.subr.bf16.mxu0 0
        %992 = vmatpush2.bf16.msra.mxu0 0
        %993 = vmatprep.mubr.bf16.mxu0 0
        %994 = vmatmul.mubr.bf16.gmra.mxu0 %v957
        %v995 = vpop.f32.mrf.mxu0
        %v996 = vadd.f32 %v960, %v995
        %v997 = vpop.f32.mrf.mxu0
        %v998 = vpop.f32.mrf.mxu0
        %v999 = vpop.f32.mrf.mxu0
        %1000 = vdwg.mxu0
        %v1001 = vtanh.pop %v996
        %vm1002 = vcmp.gt.s32.totalorder %v582, 6
        %v1003 = vsel %vm1002, 1, 0
        %1004 = vset.pattern.permute.xlu0 0
        %1005 = vperm.xlu0 %1004, %v1003
        %v1006 = vpop.permute.xlu0 %1005
        %vm1007 = vcmp.eq.s32.totalorder %v1006, 1
        %v1008 = vsel %vm1007, %v1001, %v956
        %v1009 = vpack.c.bf16 %v1008, %v1008
        %s1010 = scalar_lea.vmem %s525, 28 [#allocation2]
        %v1011 = vld [vmem:[%s1010] sm:$0xf]
        %v1012 = vunpack.c.l.bf16 %v1011
        %1013 = vmatprep.subr.bf16.mxu0 0
        %1014 = vmatpush1.bf16.msra.mxu0 %v640
        %1015 = vmatprep.subr.bf16.mxu0 0
        %1016 = vmatpush1.bf16.msra.mxu0 %v639
        %1017 = vmatprep.subr.bf16.mxu0 0
        %1018 = vmatpush1.bf16.msra.mxu0 %v638
        %1019 = vmatprep.subr.bf16.mxu0 0
        %1020 = vmatpush1.bf16.msra.mxu0 %v637
        %1021 = vmatprep.subr.bf16.mxu0 0
        %1022 = vmatpush1.bf16.msra.mxu0 %v636
        %1023 = vmatprep.subr.bf16.mxu0 0
        %1024 = vmatpush1.bf16.msra.mxu0 %v635
        %1025 = vmatprep.subr.bf16.mxu0 0
        %1026 = vmatpush1.bf16.msra.mxu0 %v634
        %1027 = vmatprep.subr.bf16.mxu0 0
        %1028 = vmatpush1.bf16.msra.mxu0 %v633
        %1029 = vmatprep.subr.bf16.mxu0 0
        %1030 = vmatpush2.bf16.msra.mxu0 0
        %1031 = vmatprep.subr.bf16.mxu0 0
        %1032 = vmatpush2.bf16.msra.mxu0 0
        %1033 = vmatprep.subr.bf16.mxu0 0
        %1034 = vmatpush2.bf16.msra.mxu0 0
        %1035 = vmatprep.subr.bf16.mxu0 0
        %1036 = vmatpush2.bf16.msra.mxu0 0
        %1037 = vmatprep.subr.bf16.mxu0 0
        %1038 = vmatpush2.bf16.msra.mxu0 0
        %1039 = vmatprep.subr.bf16.mxu0 0
        %1040 = vmatpush2.bf16.msra.mxu0 0
        %1041 = vmatprep.subr.bf16.mxu0 0
        %1042 = vmatpush2.bf16.msra.mxu0 0
        %1043 = vmatprep.subr.bf16.mxu0 0
        %1044 = vmatpush2.bf16.msra.mxu0 0
        %1045 = vmatprep.mubr.bf16.mxu0 0
        %1046 = vmatmul.mubr.bf16.gmra.mxu0 %v1009
        %v1047 = vpop.f32.mrf.mxu0
        %v1048 = vadd.f32 %v1012, %v1047
        %v1049 = vpop.f32.mrf.mxu0
        %v1050 = vpop.f32.mrf.mxu0
        %v1051 = vpop.f32.mrf.mxu0
        %1052 = vdwg.mxu0
        %v1053 = vtanh.pop %v1048
        %vm1054 = vcmp.gt.s32.totalorder %v582, 7
        %v1055 = vsel %vm1054, 1, 0
        %1056 = vset.pattern.permute.xlu0 0
        %1057 = vperm.xlu0 %1056, %v1055
        %v1058 = vpop.permute.xlu0 %1057
        %vm1059 = vcmp.eq.s32.totalorder %v1058, 1
        %v1060 = vsel %vm1059, %v1053, %v1008
        %v1061 = vld [vmem:[%s3] sm:$0x1]
        %v1062 = vld [vmem:[%s4] sm:$0x1]
        %1063 = vadd.xlane.f32.xlu0 %v1060
        %v1064 = vpop.xlane.xlu0 %1063
        %v1065 = vrcp.pop 128.0
        %v1066 = vmul.f32 %v1064, %v1065
        %v1067 = vsub.f32 %v1060, %v1066
        %v1068 = vmul.f32 %v1067, %v1067
        %1069 = vadd.xlane.f32.xlu0 %v1068
        %v1070 = vpop.xlane.xlu0 %1069
        %v1071 = vrcp.pop 127.0
        %v1072 = vmul.f32 %v1070, %v1071
        %v1073 = vrsqrt.pop %v1072
        %v1074 = vmul.f32 %v1072, %v1073
        %vm1075 = vcmp.eq.f32.partialorder %v1072, inf
        %v1076 = vsel %vm1075, %v1072, %v1074
        %vm1077 = vcmp.eq.f32.partialorder %v1072, 0.0
        %v1078 = vand.u32 %v1072, 2147483648
        %v1079 = vsel %vm1077, %v1078, %v1076
        %v1080 = vadd.f32 %v1079, 0.001
        %v1081 = vrcp.pop %v1080
        %v1082 = vmul.f32 %v1067, %v1081
        %v1084 = vlaneseq
        %v1085 = vshrl.u32 %v1084, 7
        %v1086 = vsub.s32 0, %v1085
        %v1087 = vrot.slane %v1061, %v1086
        %v1089 = vmul.f32 %v1082, %v1087
        %v1091 = vlaneseq
        %v1092 = vshrl.u32 %v1091, 7
        %v1093 = vsub.s32 0, %v1092
        %v1094 = vrot.slane %v1062, %v1093
        %v1096 = vadd.f32 %v1089, %v1094
        %v1097 = vld [vmem:[%s5] sm:$0xff]
        %v1098 = vld [vmem:[%s5 + $0x8] sm:$0xff]
        %v1099 = vld [vmem:[%s5 + $0x10] sm:$0xff]
        %v1100 = vld [vmem:[%s5 + $0x18] sm:$0xff]
        %v1101 = vld [vmem:[%s5 + $0x20] sm:$0xff]
        %v1102 = vld [vmem:[%s5 + $0x28] sm:$0xff]
        %v1103 = vld [vmem:[%s5 + $0x30] sm:$0xff]
        %v1104 = vld [vmem:[%s5 + $0x38] sm:$0xff]
        %v1105 = vld [vmem:[%s5 + $0x40] sm:$0xff]
        %v1106 = vld [vmem:[%s5 + $0x48] sm:$0xff]
        %v1107 = vld [vmem:[%s5 + $0x50] sm:$0xff]
        %v1108 = vld [vmem:[%s5 + $0x58] sm:$0xff]
        %v1109 = vld [vmem:[%s5 + $0x60] sm:$0xff]
        %v1110 = vld [vmem:[%s5 + $0x68] sm:$0xff]
        %v1111 = vld [vmem:[%s5 + $0x70] sm:$0xff]
        %v1112 = vld [vmem:[%s5 + $0x78] sm:$0xff]
        %v1113 = vld [vmem:[%s6] sm:$0x1]
        %v1115 = vlaneseq
        %v1116 = vshrl.u32 %v1115, 7
        %v1117 = vsub.s32 0, %v1116
        %v1118 = vrot.slane %v1113, %v1117
        %1120 = vmatprep.subr.mxu0 0.0
        %1121 = vmatpush1.msra.mxu0 %v1112
        %1122 = vmatprep.subr.mxu0 0.0
        %1123 = vmatpush1.msra.mxu0 %v1111
        %1124 = vmatprep.subr.mxu0 0.0
        %1125 = vmatpush1.msra.mxu0 %v1110
        %1126 = vmatprep.subr.mxu0 0.0
        %1127 = vmatpush1.msra.mxu0 %v1109
        %1128 = vmatprep.subr.mxu0 0.0
        %1129 = vmatpush1.msra.mxu0 %v1108
        %1130 = vmatprep.subr.mxu0 0.0
        %1131 = vmatpush1.msra.mxu0 %v1107
        %1132 = vmatprep.subr.mxu0 0.0
        %1133 = vmatpush1.msra.mxu0 %v1106
        %1134 = vmatprep.subr.mxu0 0.0
        %1135 = vmatpush1.msra.mxu0 %v1105
        %1136 = vmatprep.subr.mxu0 0.0
        %1137 = vmatpush1.msra.mxu0 %v1104
        %1138 = vmatprep.subr.mxu0 0.0
        %1139 = vmatpush1.msra.mxu0 %v1103
        %1140 = vmatprep.subr.mxu0 0.0
        %1141 = vmatpush1.msra.mxu0 %v1102
        %1142 = vmatprep.subr.mxu0 0.0
        %1143 = vmatpush1.msra.mxu0 %v1101
        %1144 = vmatprep.subr.mxu0 0.0
        %1145 = vmatpush1.msra.mxu0 %v1100
        %1146 = vmatprep.subr.mxu0 0.0
        %1147 = vmatpush1.msra.mxu0 %v1099
        %1148 = vmatprep.subr.mxu0 0.0
        %1149 = vmatpush1.msra.mxu0 %v1098
        %1150 = vmatprep.subr.mxu0 0.0
        %1151 = vmatpush1.msra.mxu0 %v1097
        %1152 = vmatprep.subr.mxu0 0.0
        %1153 = vmatpush2.msra.mxu0 0.0
        %1154 = vmatprep.subr.mxu0 0.0
        %1155 = vmatpush2.msra.mxu0 0.0
        %1156 = vmatprep.subr.mxu0 0.0
        %1157 = vmatpush2.msra.mxu0 0.0
        %1158 = vmatprep.subr.mxu0 0.0
        %1159 = vmatpush2.msra.mxu0 0.0
        %1160 = vmatprep.subr.mxu0 0.0
        %1161 = vmatpush2.msra.mxu0 0.0
        %1162 = vmatprep.subr.mxu0 0.0
        %1163 = vmatpush2.msra.mxu0 0.0
        %1164 = vmatprep.subr.mxu0 0.0
        %1165 = vmatpush2.msra.mxu0 0.0
        %1166 = vmatprep.subr.mxu0 0.0
        %1167 = vmatpush2.msra.mxu0 0.0
        %1168 = vmatprep.subr.mxu0 0.0
        %1169 = vmatpush2.msra.mxu0 0.0
        %1170 = vmatprep.subr.mxu0 0.0
        %1171 = vmatpush2.msra.mxu0 0.0
        %1172 = vmatprep.subr.mxu0 0.0
        %1173 = vmatpush2.msra.mxu0 0.0
        %1174 = vmatprep.subr.mxu0 0.0
        %1175 = vmatpush2.msra.mxu0 0.0
        %1176 = vmatprep.subr.mxu0 0.0
        %1177 = vmatpush2.msra.mxu0 0.0
        %1178 = vmatprep.subr.mxu0 0.0
        %1179 = vmatpush2.msra.mxu0 0.0
        %1180 = vmatprep.subr.mxu0 0.0
        %1181 = vmatpush2.msra.mxu0 0.0
        %1182 = vmatprep.subr.mxu0 0.0
        %1183 = vmatpush2.msra.mxu0 0.0
        %1184 = vmatprep.mubr.f32.mxu0 0.0
        %1185 = vmatmul.mubr.f32.gmra.mxu0 %v1096
        %v1186 = vpop.f32.mrf.mxu0
        %v1187 = vadd.f32 %v1118, %v1186
        %v1188 = vpop.f32.mrf.mxu0
        %1189 = vdwg.mxu0
        %v1190 = vmax.f32 %v1187, 0.0
        %v1191 = vld [vmem:[%s7] sm:$0x1]
        %v1192 = vld [vmem:[%s8] sm:$0x1]
        %vm1193 = vcmask 130048
        %v1194 = vsel %vm1193, %v1190, 0.0
        %1195 = vadd.xlane.f32.xlu0 %v1194
        %v1196 = vpop.xlane.xlu0 %1195
        %v1197 = vrcp.pop 16.0
        %v1198 = vmul.f32 %v1196, %v1197
        %v1199 = vsub.f32 %v1190, %v1198
        %v1200 = vmul.f32 %v1199, %v1199
        %v1201 = vsel %vm1193, %v1200, 0.0
        %1202 = vadd.xlane.f32.xlu0 %v1201
        %v1203 = vpop.xlane.xlu0 %1202
        %v1204 = vrcp.pop 15.0
        %v1205 = vmul.f32 %v1203, %v1204
        %v1206 = vrsqrt.pop %v1205
        %v1207 = vmul.f32 %v1205, %v1206
        %vm1208 = vcmp.eq.f32.partialorder %v1205, inf
        %v1209 = vsel %vm1208, %v1205, %v1207
        %vm1210 = vcmp.eq.f32.partialorder %v1205, 0.0
        %v1211 = vand.u32 %v1205, 2147483648
        %v1212 = vsel %vm1210, %v1211, %v1209
        %v1213 = vadd.f32 %v1212, 0.001
        %v1214 = vrcp.pop %v1213
        %v1215 = vmul.f32 %v1199, %v1214
        %v1217 = vlaneseq
        %v1218 = vshrl.u32 %v1217, 7
        %v1219 = vsub.s32 0, %v1218
        %v1220 = vrot.slane %v1191, %v1219
        %v1222 = vmul.f32 %v1215, %v1220
        %v1224 = vlaneseq
        %v1225 = vshrl.u32 %v1224, 7
        %v1226 = vsub.s32 0, %v1225
        %v1227 = vrot.slane %v1192, %v1226
        %v1229 = vadd.f32 %v1222, %v1227
        %v1230 = vld [vmem:[%s9] sm:$0xff]
        %v1231 = vld [vmem:[%s9 + $0x8] sm:$0xff]
        %v1232 = vld [vmem:[%s10] sm:$0x1]
        %v1234 = vlaneseq
        %v1235 = vshrl.u32 %v1234, 7
        %v1236 = vsub.s32 0, %v1235
        %v1237 = vrot.slane %v1232, %v1236
        %v1240 = vsel %vm1193, %v1229, 0
        %1242 = vmatprep.subr.mxu0 0.0
        %1243 = vmatpush1.msra.mxu0 0.0
        %1244 = vmatprep.subr.mxu0 0.0
        %1245 = vmatpush1.msra.mxu0 0.0
        %1246 = vmatprep.subr.mxu0 0.0
        %1247 = vmatpush1.msra.mxu0 0.0
        %1248 = vmatprep.subr.mxu0 0.0
        %1249 = vmatpush1.msra.mxu0 0.0
        %1250 = vmatprep.subr.mxu0 0.0
        %1251 = vmatpush1.msra.mxu0 0.0
        %1252 = vmatprep.subr.mxu0 0.0
        %1253 = vmatpush1.msra.mxu0 0.0
        %1254 = vmatprep.subr.mxu0 0.0
        %1255 = vmatpush1.msra.mxu0 0.0
        %1256 = vmatprep.subr.mxu0 0.0
        %1257 = vmatpush1.msra.mxu0 0.0
        %1258 = vmatprep.subr.mxu0 0.0
        %1259 = vmatpush1.msra.mxu0 0.0
        %1260 = vmatprep.subr.mxu0 0.0
        %1261 = vmatpush1.msra.mxu0 0.0
        %1262 = vmatprep.subr.mxu0 0.0
        %1263 = vmatpush1.msra.mxu0 0.0
        %1264 = vmatprep.subr.mxu0 0.0
        %1265 = vmatpush1.msra.mxu0 0.0
        %1266 = vmatprep.subr.mxu0 0.0
        %1267 = vmatpush1.msra.mxu0 0.0
        %1268 = vmatprep.subr.mxu0 0.0
        %1269 = vmatpush1.msra.mxu0 0.0
        %1270 = vmatprep.subr.mxu0 0.0
        %1271 = vmatpush1.msra.mxu0 %v1231
        %1272 = vmatprep.subr.mxu0 0.0
        %1273 = vmatpush1.msra.mxu0 %v1230
        %1274 = vmatprep.subr.mxu0 0.0
        %1275 = vmatpush2.msra.mxu0 0.0
        %1276 = vmatprep.subr.mxu0 0.0
        %1277 = vmatpush2.msra.mxu0 0.0
        %1278 = vmatprep.subr.mxu0 0.0
        %1279 = vmatpush2.msra.mxu0 0.0
        %1280 = vmatprep.subr.mxu0 0.0
        %1281 = vmatpush2.msra.mxu0 0.0
        %1282 = vmatprep.subr.mxu0 0.0
        %1283 = vmatpush2.msra.mxu0 0.0
        %1284 = vmatprep.subr.mxu0 0.0
        %1285 = vmatpush2.msra.mxu0 0.0
        %1286 = vmatprep.subr.mxu0 0.0
        %1287 = vmatpush2.msra.mxu0 0.0
        %1288 = vmatprep.subr.mxu0 0.0
        %1289 = vmatpush2.msra.mxu0 0.0
        %1290 = vmatprep.subr.mxu0 0.0
        %1291 = vmatpush2.msra.mxu0 0.0
        %1292 = vmatprep.subr.mxu0 0.0
        %1293 = vmatpush2.msra.mxu0 0.0
        %1294 = vmatprep.subr.mxu0 0.0
        %1295 = vmatpush2.msra.mxu0 0.0
        %1296 = vmatprep.subr.mxu0 0.0
        %1297 = vmatpush2.msra.mxu0 0.0
        %1298 = vmatprep.subr.mxu0 0.0
        %1299 = vmatpush2.msra.mxu0 0.0
        %1300 = vmatprep.subr.mxu0 0.0
        %1301 = vmatpush2.msra.mxu0 0.0
        %1302 = vmatprep.subr.mxu0 0.0
        %1303 = vmatpush2.msra.mxu0 0.0
        %1304 = vmatprep.subr.mxu0 0.0
        %1305 = vmatpush2.msra.mxu0 0.0
        %1306 = vmatprep.mubr.f32.mxu0 0.0
        %1307 = vmatmul.mubr.f32.gmra.mxu0 %v1240
        %v1308 = vpop.f32.mrf.mxu0
        %v1309 = vadd.f32 %v1237, %v1308
        %v1310 = vpop.f32.mrf.mxu0
        %1311 = vdwg.mxu0
        %v1312 = vmax.f32 %v1309, 0.0
        %v1313 = vld [vmem:[%s11] sm:$0x1]
        %v1314 = vld [vmem:[%s12] sm:$0x1]
        %v1315 = vsel %vm1193, %v1312, 0.0
        %1316 = vadd.xlane.f32.xlu0 %v1315
        %v1317 = vpop.xlane.xlu0 %1316
        %v1318 = vmul.f32 %v1317, %v1197
        %v1319 = vsub.f32 %v1312, %v1318
        %v1320 = vmul.f32 %v1319, %v1319
        %v1321 = vsel %vm1193, %v1320, 0.0
        %1322 = vadd.xlane.f32.xlu0 %v1321
        %v1323 = vpop.xlane.xlu0 %1322
        %v1324 = vmul.f32 %v1323, %v1204
        %v1325 = vrsqrt.pop %v1324
        %v1326 = vmul.f32 %v1324, %v1325
        %vm1327 = vcmp.eq.f32.partialorder %v1324, inf
        %v1328 = vsel %vm1327, %v1324, %v1326
        %vm1329 = vcmp.eq.f32.partialorder %v1324, 0.0
        %v1330 = vand.u32 %v1324, 2147483648
        %v1331 = vsel %vm1329, %v1330, %v1328
        %v1332 = vadd.f32 %v1331, 0.001
        %v1333 = vrcp.pop %v1332
        %v1334 = vmul.f32 %v1319, %v1333
        %v1336 = vlaneseq
        %v1337 = vshrl.u32 %v1336, 7
        %v1338 = vsub.s32 0, %v1337
        %v1339 = vrot.slane %v1313, %v1338
        %v1341 = vmul.f32 %v1334, %v1339
        %v1343 = vlaneseq
        %v1344 = vshrl.u32 %v1343, 7
        %v1345 = vsub.s32 0, %v1344
        %v1346 = vrot.slane %v1314, %v1345
        %v1348 = vadd.f32 %v1341, %v1346
        %v1349 = vld [vmem:[%s13] sm:$0xff]
        %v1350 = vld [vmem:[%s13 + $0x8] sm:$0xff]
        %v1351 = vld [vmem:[%s14] sm:$0x1]
        %v1353 = vlaneseq
        %v1354 = vshrl.u32 %v1353, 7
        %v1355 = vsub.s32 0, %v1354
        %v1356 = vrot.slane %v1351, %v1355
        %v1359 = vsel %vm1193, %v1348, 0
        %1361 = vmatprep.subr.mxu0 0.0
        %1362 = vmatpush1.msra.mxu0 0.0
        %1363 = vmatprep.subr.mxu0 0.0
        %1364 = vmatpush1.msra.mxu0 0.0
        %1365 = vmatprep.subr.mxu0 0.0
        %1366 = vmatpush1.msra.mxu0 0.0
        %1367 = vmatprep.subr.mxu0 0.0
        %1368 = vmatpush1.msra.mxu0 0.0
        %1369 = vmatprep.subr.mxu0 0.0
        %1370 = vmatpush1.msra.mxu0 0.0
        %1371 = vmatprep.subr.mxu0 0.0
        %1372 = vmatpush1.msra.mxu0 0.0
        %1373 = vmatprep.subr.mxu0 0.0
        %1374 = vmatpush1.msra.mxu0 0.0
        %1375 = vmatprep.subr.mxu0 0.0
        %1376 = vmatpush1.msra.mxu0 0.0
        %1377 = vmatprep.subr.mxu0 0.0
        %1378 = vmatpush1.msra.mxu0 0.0
        %1379 = vmatprep.subr.mxu0 0.0
        %1380 = vmatpush1.msra.mxu0 0.0
        %1381 = vmatprep.subr.mxu0 0.0
        %1382 = vmatpush1.msra.mxu0 0.0
        %1383 = vmatprep.subr.mxu0 0.0
        %1384 = vmatpush1.msra.mxu0 0.0
        %1385 = vmatprep.subr.mxu0 0.0
        %1386 = vmatpush1.msra.mxu0 0.0
        %1387 = vmatprep.subr.mxu0 0.0
        %1388 = vmatpush1.msra.mxu0 0.0
        %1389 = vmatprep.subr.mxu0 0.0
        %1390 = vmatpush1.msra.mxu0 %v1350
        %1391 = vmatprep.subr.mxu0 0.0
        %1392 = vmatpush1.msra.mxu0 %v1349
        %1393 = vmatprep.subr.mxu0 0.0
        %1394 = vmatpush2.msra.mxu0 0.0
        %1395 = vmatprep.subr.mxu0 0.0
        %1396 = vmatpush2.msra.mxu0 0.0
        %1397 = vmatprep.subr.mxu0 0.0
        %1398 = vmatpush2.msra.mxu0 0.0
        %1399 = vmatprep.subr.mxu0 0.0
        %1400 = vmatpush2.msra.mxu0 0.0
        %1401 = vmatprep.subr.mxu0 0.0
        %1402 = vmatpush2.msra.mxu0 0.0
        %1403 = vmatprep.subr.mxu0 0.0
        %1404 = vmatpush2.msra.mxu0 0.0
        %1405 = vmatprep.subr.mxu0 0.0
        %1406 = vmatpush2.msra.mxu0 0.0
        %1407 = vmatprep.subr.mxu0 0.0
        %1408 = vmatpush2.msra.mxu0 0.0
        %1409 = vmatprep.subr.mxu0 0.0
        %1410 = vmatpush2.msra.mxu0 0.0
        %1411 = vmatprep.subr.mxu0 0.0
        %1412 = vmatpush2.msra.mxu0 0.0
        %1413 = vmatprep.subr.mxu0 0.0
        %1414 = vmatpush2.msra.mxu0 0.0
        %1415 = vmatprep.subr.mxu0 0.0
        %1416 = vmatpush2.msra.mxu0 0.0
        %1417 = vmatprep.subr.mxu0 0.0
        %1418 = vmatpush2.msra.mxu0 0.0
        %1419 = vmatprep.subr.mxu0 0.0
        %1420 = vmatpush2.msra.mxu0 0.0
        %1421 = vmatprep.subr.mxu0 0.0
        %1422 = vmatpush2.msra.mxu0 0.0
        %1423 = vmatprep.subr.mxu0 0.0
        %1424 = vmatpush2.msra.mxu0 0.0
        %1425 = vmatprep.mubr.f32.mxu0 0.0
        %1426 = vmatmul.mubr.f32.gmra.mxu0 %v1359
        %v1427 = vpop.f32.mrf.mxu0
        %v1428 = vadd.f32 %v1356, %v1427
        %v1429 = vpop.f32.mrf.mxu0
        %1430 = vdwg.mxu0
        %1431 = vst [vmem:[%s580] sm:$0xff] %v1428
        %p1432 = scmp.lt.s32.totalorder %s26, 1
        %s1433 = scalar_select %p1432, %s26, 1
        %s1434 = smul.addr %s1433, 8
        %s1435 = scalar_lea.vmem %s15, %s1434
        // Predicated region
        $region122: #{model_forward.1} parent=116 // pred_check
          %p1436 = pneg %p369
        $region123: #{model_forward.1} parent=116 // pred_check_branch
          %1438 = sbr.rel (%p1436) target = $region125
        $region124: #{model_forward.1} parent=116 // pred_region
          _
        $region125: #{model_forward.1} parent=116 // pred_fallthru
          _
      $region117: #{model_forward.1} parent=5 // pred_fallthru
        _
      %p1439 = scmp.le.s32.totalorder 2, %s21
      // Predicated region
      $region126: #{model_forward.1} parent=5 // pred_check
        %p1440 = pneg %p1439
      $region127: #{model_forward.1} parent=5 // pred_check_branch
        %1442 = sbr.rel (%p1440) target = $region129
      $region128: #{model_forward.1} parent=5 // pred_region
        %s1443 = ssub.s32 %s21, 2
        // Predicated region
        $region130: #{model_forward.1} parent=128 // pred_check
          %p1444 = pneg %p375
        $region131: #{model_forward.1} parent=128 // pred_check_branch
          %1446 = sbr.rel (%p1444) target = $region133
        $region132: #{model_forward.1} parent=128 // pred_region
          %p1447 = scmp.lt.s32.totalorder %s27, 1
          %s1448 = scalar_select %p1447, %s27, 1
          %s1449 = smul.addr %s1448, 8
          %s1450 = scalar_lea.vmem %s15, %s1449
        $region133: #{model_forward.1} parent=128 // pred_fallthru
          _
      $region129: #{model_forward.1} parent=5 // pred_fallthru
        _
    $region6: #{model_forward.1} parent=1 // loop_footer
      %s25 = sadd.s32 1, %s21
    $region7: #{model_forward.1} parent=1 // loop_footer_branch
      %20 = sbr.rel target = $region3
    $region8: #{model_forward.1} parent=1 // loop_exit
      _

</llo_original>
